<compile_context>
chip_gen: v6e
topology: v6e:2x2x1
jax: 0.10.0
libtpu: 0.0.40
codegen_flags: <defaults>
</compile_context>

<pallas_src>
import functools
import math

import jax
import jax.numpy as jnp
from jax.experimental import pallas as pl
from jax.experimental.pallas import tpu as pltpu

LOG2 = math.log(2.0)


def _ssp(x):
    # ShiftedSoftplus
    return jax.nn.softplus(x) - LOG2


def _round_up(x, m):
    return (x + m - 1) // m * m


def _message_kernel(exp_ref, dist_ref, mask_ref, pres_ref, prer_ref,
                    w1e_ref, b1e_ref, w2e_ref, b2e_ref, w2n_ref, b2n_ref,
                    out_ref, *, tr, ts, nf, cutoff):
    s_idx = pl.program_id(2)

    # Output block index is constant along the sender axis -> it is the accumulator.
    @pl.when(s_idx == 0)
    def _():
        out_ref[...] = jnp.zeros_like(out_ref)

    # ---- fused per-edge scalar: mask * soft_cutoff(distance), lane-dense (TR, TS) ----
    cm = mask_ref[...] * (1.0 - jax.nn.sigmoid(
        5.0 * (dist_ref[...] - (cutoff - 1.5))))                          # (TR, TS) f32

    # ---- edge MLP: gates = W2e @ ssp(W1e @ expansion + b1e) + b2e ----
    # (TR, TS, E) -> (TR*TS, E) is layout-free because TS % 8 == 0.
    exp2 = exp_ref[...].reshape(tr * ts, -1)                              # bf16
    h = jnp.dot(exp2, w1e_ref[...],
                preferred_element_type=jnp.float32) + b1e_ref[...]        # (TR*TS, F) f32
    gates = jnp.dot(_ssp(h).astype(jnp.bfloat16), w2e_ref[...],
                    preferred_element_type=jnp.float32) + b2e_ref[...]    # (TR*TS, F) f32

    # ---- node MLP on concat(sender, receiver): the first-layer pre-activations
    #      (pres = scalar @ W_src, prer = reciever @ W_rcv + b1n) come precomputed ----
    pair = _ssp(prer_ref[...][:, None, :] + pres_ref[...][None, :, :])    # (TR, TS, F) f32
    nodes = jnp.dot(pair.astype(jnp.bfloat16).reshape(tr * ts, nf),
                    w2n_ref[...],
                    preferred_element_type=jnp.float32) + b2n_ref[...]    # (TR*TS, F) f32

    # ---- gate, mask and accumulate the partial sender-sum of this tile ----
    msg = (gates * nodes).reshape(tr, ts, nf)                             # layout-free
    out_ref[...] += jnp.sum(cm[:, :, None] * msg, axis=1)                 # (TR, F)


def deepdft_message(scalar, scalar_reciever, expansion, mask, edge_distance,
                    params, cutoff):
    B, Ns, D2, F = scalar.shape
    _, Nr, _, _ = scalar_reciever.shape
    E = expansion.shape[-1]
    # TODO(synk): D2 > 1 (extra scalar-channel dim) would be handled by folding it
    # into the batch axis with shared gates; standard DeepDFT usage has D2 == 1.
    assert D2 == 1

    f32, bf16 = jnp.float32, jnp.bfloat16

    # ---- tile sizes: one grid step handles TR receivers x TS senders (~2048 edges) ----
    TS = min(_round_up(Ns, 8), 256)                          # sender (reduction) tile
    TR = min(_round_up(Nr, 8), max(8, _round_up(max(1, 2048 // TS), 8)))
    Ns_p = _round_up(Ns, TS)
    Nr_p = _round_up(Nr, TR)

    # ---- node-MLP first layer, computed once per node (reused by every edge tile);
    #      the concat(scalar, reciever) is folded by splitting the (2F, F) weight ----
    scal2 = scalar.reshape(B, Ns, F).astype(f32)
    recv2 = scalar_reciever.reshape(B, Nr, F).astype(f32)
    pre_s = jnp.einsum("bsf,fg->bsg", scal2, params["w1n_src"].astype(f32))
    pre_r = (jnp.einsum("brf,fg->brg", recv2, params["w1n_rcv"].astype(f32))
             + params["b1n"].astype(f32)[0])

    # ---- pad node axes to tile multiples (padded edges carry mask == 0) ----
    pre_s = jnp.pad(pre_s, ((0, 0), (0, Ns_p - Ns), (0, 0)))
    pre_r = jnp.pad(pre_r, ((0, 0), (0, Nr_p - Nr), (0, 0)))
    exp4 = jnp.pad(expansion.astype(bf16),
                   ((0, 0), (0, Nr_p - Nr), (0, Ns_p - Ns), (0, 0)))
    dist3 = jnp.pad(edge_distance.reshape(B, Nr, Ns).astype(f32),
                    ((0, 0), (0, Nr_p - Nr), (0, Ns_p - Ns)))
    mask3 = jnp.pad(mask.reshape(B, Nr, Ns).astype(f32),
                    ((0, 0), (0, Nr_p - Nr), (0, Ns_p - Ns)))

    grid = (B, Nr_p // TR, Ns_p // TS)
    kernel = functools.partial(_message_kernel, tr=TR, ts=TS, nf=F,
                               cutoff=float(cutoff))
    wspec = lambda shape: pl.BlockSpec(shape, lambda b, r, s: (0, 0))

    out = pl.pallas_call(
        kernel,
        out_shape=jax.ShapeDtypeStruct((B, Nr_p, F), f32),
        grid=grid,
        in_specs=[
            pl.BlockSpec((None, TR, TS, E), lambda b, r, s: (b, r, s, 0)),  # expansion (bf16)
            pl.BlockSpec((None, TR, TS), lambda b, r, s: (b, r, s)),        # distance (lane-dense)
            pl.BlockSpec((None, TR, TS), lambda b, r, s: (b, r, s)),        # mask (lane-dense)
            pl.BlockSpec((None, TS, F), lambda b, r, s: (b, s, 0)),         # pre_s (sender tile)
            pl.BlockSpec((None, TR, F), lambda b, r, s: (b, r, 0)),         # pre_r (resident over s)
            wspec((E, F)), wspec((1, F)),                                   # edge Linear 1
            wspec((F, F)), wspec((1, F)),                                   # edge Linear 2
            wspec((F, F)), wspec((1, F)),                                   # node Linear 2
        ],
        out_specs=pl.BlockSpec((None, TR, F), lambda b, r, s: (b, r, 0)),
        compiler_params=pltpu.CompilerParams(
            dimension_semantics=("parallel", "parallel", "arbitrary"),
            vmem_limit_bytes=48 * 1024 * 1024,
        ),
    )(exp4, dist3, mask3, pre_s, pre_r,
      params["w1e"].astype(bf16), params["b1e"].astype(f32),
      params["w2e"].astype(bf16), params["b2e"].astype(f32),
      params["w2n"].astype(bf16), params["b2n"].astype(f32))

    return out[:, :Nr, :].reshape(B, Nr, 1, F)


def reference(scalar, scalar_reciever, expansion, mask, edge_distance,
              params, cutoff):
    """Plain-JAX (f32) transcription of the PyTorch forward (for validation)."""
    g = jnp.dot(expansion, params["w1e"]) + params["b1e"][0]
    g = jnp.dot(_ssp(g), params["w2e"]) + params["b2e"][0]
    g = g * (1.0 - jax.nn.sigmoid(5.0 * (edge_distance - (cutoff - 1.5))))

    B, Ns, D2, F = scalar.shape
    Nr = scalar_reciever.shape[1]
    ext1 = jnp.broadcast_to(scalar[:, None, :, :, :], (B, Nr, Ns, D2, F))
    ext2 = jnp.broadcast_to(scalar_reciever[:, :, None, :, :], (B, Nr, Ns, D2, F))
    pair = jnp.concatenate([ext1, ext2], axis=-1)

    w1n = jnp.concatenate([params["w1n_src"], params["w1n_rcv"]], axis=0)
    n = jnp.dot(pair, w1n) + params["b1n"][0]
    n = jnp.dot(_ssp(n), params["w2n"]) + params["b2n"][0]

    result = mask[..., None] * (g[..., None, :] * n)
    return jnp.sum(result, axis=-3)


def init_params(key, E, F):
    ks = jax.random.split(key, 6)
    s = 0.2
    return {
        "w1e": s * jax.random.normal(ks[0], (E, F), jnp.float32),
        "b1e": s * jax.random.normal(ks[1], (1, F), jnp.float32),
        "w2e": s * jax.random.normal(ks[2], (F, F), jnp.float32),
        "b2e": jnp.zeros((1, F), jnp.float32),
        "w1n_src": s * jax.random.normal(ks[3], (F, F), jnp.float32),
        "w1n_rcv": s * jax.random.normal(ks[4], (F, F), jnp.float32),
        "b1n": jnp.zeros((1, F), jnp.float32),
        "w2n": s * jax.random.normal(ks[5], (F, F), jnp.float32),
        "b2n": jnp.zeros((1, F), jnp.float32),
    }


if __name__ == "__main__":
    B, Ns, Nr, F, E = 2, 8, 8, 32, 20
    CUTOFF = 4.0

    key = jax.random.PRNGKey(0)
    k1, k2, k3, k4, k5, kp = jax.random.split(key, 6)

    scalar = jax.random.normal(k1, (B, Ns, 1, F), jnp.float32)
    scalar_reciever = jax.random.normal(k2, (B, Nr, 1, F), jnp.float32)
    expansion = jax.random.normal(k3, (B, Nr, Ns, E), jnp.float32)
    edge_distance = jax.random.uniform(k4, (B, Nr, Ns, 1), jnp.float32,
                                       minval=0.1, maxval=6.0)
    mask = (jax.random.uniform(k5, (B, Nr, Ns, 1)) > 0.3).astype(jnp.float32)

    params = init_params(kp, E, F)

    out = deepdft_message(scalar, scalar_reciever, expansion, mask,
                          edge_distance, params, CUTOFF)
    out = jax.block_until_ready(out)

    # Reference evaluated at the same bf16-representable MXU operands the kernel
    # uses (kernel accumulates in f32), so the check isolates kernel error from
    # plain input quantization.
    q = lambda a: a.astype(jnp.bfloat16).astype(jnp.float32)
    params_q = dict(params)
    for name in ("w1e", "w2e", "w2n"):
        params_q[name] = q(params[name])
    ref = reference(scalar, scalar_reciever, q(expansion), mask,
                    edge_distance, params_q, CUTOFF)
    ref = jax.block_until_ready(ref)

    assert out.shape == (B, Nr, 1, F), out.shape
    assert bool(jnp.all(jnp.isfinite(out)))
    rel_err = float(jnp.max(jnp.abs(out - ref))) / (float(jnp.max(jnp.abs(ref))) + 1e-6)
    assert rel_err < 2e-2, rel_err

    print("KERNEL_OK")
</pallas_src>

<mosaic_0001>
module attributes {stable_mosaic.version = 11 : i64} {
  func.func @_message_kernel(%arg0: i32, %arg1: i32, %arg2: i32, %arg3: memref<1x8x8x20xbf16, #tpu.memory_space<vmem>>, %arg4: memref<1x8x8xf32, #tpu.memory_space<vmem>>, %arg5: memref<1x8x8xf32, #tpu.memory_space<vmem>>, %arg6: memref<1x8x32xf32, #tpu.memory_space<vmem>>, %arg7: memref<1x8x32xf32, #tpu.memory_space<vmem>>, %arg8: memref<20x32xbf16, #tpu.memory_space<vmem>>, %arg9: memref<1x32xf32, #tpu.memory_space<vmem>>, %arg10: memref<32x32xbf16, #tpu.memory_space<vmem>>, %arg11: memref<1x32xf32, #tpu.memory_space<vmem>>, %arg12: memref<32x32xbf16, #tpu.memory_space<vmem>>, %arg13: memref<1x32xf32, #tpu.memory_space<vmem>>, %arg14: memref<1x8x32xf32, #tpu.memory_space<vmem>>) attributes {dimension_semantics = [#tpu.dimension_semantics<parallel>, #tpu.dimension_semantics<parallel>, #tpu.dimension_semantics<arbitrary>], iteration_bounds = array<i64: 2, 1, 1>, scalar_prefetch = 0 : i64, scratch_operands = 0 : i64, tpu.core_type = #tpu.core_type<tc>, window_params = [{transform_indices = @transform_0, window_bounds = array<i64: 1, 8, 8, 20>}, {transform_indices = @transform_1, window_bounds = array<i64: 1, 8, 8>}, {transform_indices = @transform_2, window_bounds = array<i64: 1, 8, 8>}, {transform_indices = @transform_3, window_bounds = array<i64: 1, 8, 32>}, {transform_indices = @transform_4, window_bounds = array<i64: 1, 8, 32>}, {pipeline_mode = #tpu.pipeline_mode<synchronous>, transform_indices = @transform_5, window_bounds = array<i64: 20, 32>}, {pipeline_mode = #tpu.pipeline_mode<synchronous>, transform_indices = @transform_6, window_bounds = array<i64: 1, 32>}, {pipeline_mode = #tpu.pipeline_mode<synchronous>, transform_indices = @transform_7, window_bounds = array<i64: 32, 32>}, {pipeline_mode = #tpu.pipeline_mode<synchronous>, transform_indices = @transform_8, window_bounds = array<i64: 1, 32>}, {pipeline_mode = #tpu.pipeline_mode<synchronous>, transform_indices = @transform_9, window_bounds = array<i64: 32, 32>}, {pipeline_mode = #tpu.pipeline_mode<synchronous>, transform_indices = @transform_10, window_bounds = array<i64: 1, 32>}, {transform_indices = @transform_11, window_bounds = array<i64: 1, 8, 32>}]} {
    %c0_i32 = arith.constant 0 : i32
    %0 = arith.cmpi eq, %arg2, %c0_i32 : i32
    %1 = arith.extui %0 : i1 to i32
    %c0_i32_0 = arith.constant 0 : i32
    %2 = arith.cmpi ne, %1, %c0_i32_0 : i32
    scf.if %2 {
      %cst_47 = arith.constant 0.000000e+00 : f32
      %93 = vector.broadcast %cst_47 : f32 to vector<8x32xf32>
      %c0_48 = arith.constant 0 : index
      %c0_49 = arith.constant 0 : index
      %c0_50 = arith.constant 0 : index
      %94 = vector.load %arg14[%c0_48, %c0_49, %c0_50] : memref<1x8x32xf32, #tpu.memory_space<vmem>>, vector<1x8x32xf32>
      %95 = vector.shape_cast %94 : vector<1x8x32xf32> to vector<8x32xf32>
      %96 = vector.shape_cast %93 : vector<8x32xf32> to vector<1x8x32xf32>
      tpu.vector_store %arg14[%c0_48, %c0_49, %c0_50], %96 {strides = array<i32>} : memref<1x8x32xf32, #tpu.memory_space<vmem>>, vector<1x8x32xf32>,
    } else {
    }
    %c0 = arith.constant 0 : index
    %c0_1 = arith.constant 0 : index
    %c0_2 = arith.constant 0 : index
    %3 = vector.load %arg5[%c0, %c0_1, %c0_2] : memref<1x8x8xf32, #tpu.memory_space<vmem>>, vector<1x8x8xf32>
    %4 = vector.shape_cast %3 : vector<1x8x8xf32> to vector<8x8xf32>
    %c0_3 = arith.constant 0 : index
    %c0_4 = arith.constant 0 : index
    %c0_5 = arith.constant 0 : index
    %5 = vector.load %arg4[%c0_3, %c0_4, %c0_5] : memref<1x8x8xf32, #tpu.memory_space<vmem>>, vector<1x8x8xf32>
    %6 = vector.shape_cast %5 : vector<1x8x8xf32> to vector<8x8xf32>
    %cst = arith.constant 2.500000e+00 : f32
    %7 = vector.broadcast %cst : f32 to vector<8x8xf32>
    %8 = arith.subf %6, %7 : vector<8x8xf32>
    %cst_6 = arith.constant 5.000000e+00 : f32
    %9 = vector.broadcast %cst_6 : f32 to vector<8x8xf32>
    %10 = arith.mulf %9, %8 : vector<8x8xf32>
    %11 = arith.negf %10 : vector<8x8xf32>
    %12 = math.exp %11 : vector<8x8xf32>
    %cst_7 = arith.constant 1.000000e+00 : f32
    %13 = vector.broadcast %cst_7 : f32 to vector<8x8xf32>
    %14 = arith.addf %13, %12 : vector<8x8xf32>
    %15 = arith.divf %13, %14 : vector<8x8xf32>
    %cst_8 = arith.constant 1.000000e+00 : f32
    %16 = vector.broadcast %cst_8 : f32 to vector<8x8xf32>
    %17 = arith.subf %16, %15 : vector<8x8xf32>
    %18 = arith.mulf %4, %17 : vector<8x8xf32>
    %c0_9 = arith.constant 0 : index
    %c0_10 = arith.constant 0 : index
    %c0_11 = arith.constant 0 : index
    %c0_12 = arith.constant 0 : index
    %19 = vector.load %arg3[%c0_9, %c0_10, %c0_11, %c0_12] : memref<1x8x8x20xbf16, #tpu.memory_space<vmem>>, vector<1x8x8x20xbf16>
    %20 = vector.shape_cast %19 : vector<1x8x8x20xbf16> to vector<8x8x20xbf16>
    %21 = vector.shape_cast %20 : vector<8x8x20xbf16> to vector<64x20xbf16>
    %c0_13 = arith.constant 0 : index
    %c0_14 = arith.constant 0 : index
    %22 = vector.load %arg8[%c0_13, %c0_14] : memref<20x32xbf16, #tpu.memory_space<vmem>>, vector<20x32xbf16>
    %cst_15 = arith.constant dense<0.000000e+00> : vector<64x32xf32>
    %23 = tpu.matmul %21, %22, %cst_15 {dimension_numbers = #tpu.dot_dimension_numbers<[1], [0], [0], [1], [0, 0, 1, 1], [], []>} : vector<64x20xbf16>, vector<20x32xbf16>, vector<64x32xf32> -> vector<64x32xf32>
    %c0_16 = arith.constant 0 : index
    %c0_17 = arith.constant 0 : index
    %24 = vector.load %arg9[%c0_16, %c0_17] : memref<1x32xf32, #tpu.memory_space<vmem>>, vector<1x32xf32>
    %25 = vector.broadcast %24 : vector<1x32xf32> to vector<64x32xf32>
    %26 = arith.addf %23, %25 : vector<64x32xf32>
    %cst_18 = arith.constant 0.000000e+00 : f32
    %27 = vector.broadcast %cst_18 : f32 to vector<64x32xf32>
    %28 = arith.maximumf %26, %27 : vector<64x32xf32>
    %29 = vector.broadcast %cst_18 : f32 to vector<64x32xf32>
    %30 = arith.subf %26, %29 : vector<64x32xf32>
    %31 = arith.cmpf one, %30, %30 : vector<64x32xf32>
    %32 = vector.broadcast %cst_18 : f32 to vector<64x32xf32>
    %33 = arith.addf %26, %32 : vector<64x32xf32>
    %34 = math.absf %30 : vector<64x32xf32>
    %cst_19 = arith.constant 0.000000e+00 : f32
    %35 = vector.broadcast %cst_19 : f32 to vector<64x32xf32>
    %36 = arith.subf %35, %34 : vector<64x32xf32>
    %37 = math.exp %36 : vector<64x32xf32>
    %38 = math.log1p %37 : vector<64x32xf32>
    %39 = arith.addf %28, %38 : vector<64x32xf32>
    %40 = arith.select %31, %33, %39 : vector<64x32xi1>, vector<64x32xf32>
    %cst_20 = arith.constant 0.693147182 : f32
    %41 = vector.broadcast %cst_20 : f32 to vector<64x32xf32>
    %42 = arith.subf %40, %41 : vector<64x32xf32>
    %43 = arith.truncf %42 : vector<64x32xf32> to vector<64x32xbf16>
    %c0_21 = arith.constant 0 : index
    %c0_22 = arith.constant 0 : index
    %44 = vector.load %arg10[%c0_21, %c0_22] : memref<32x32xbf16, #tpu.memory_space<vmem>>, vector<32x32xbf16>
    %cst_23 = arith.constant dense<0.000000e+00> : vector<64x32xf32>
    %45 = tpu.matmul %43, %44, %cst_23 {dimension_numbers = #tpu.dot_dimension_numbers<[1], [0], [0], [1], [0, 0, 1, 1], [], []>} : vector<64x32xbf16>, vector<32x32xbf16>, vector<64x32xf32> -> vector<64x32xf32>
    %c0_24 = arith.constant 0 : index
    %c0_25 = arith.constant 0 : index
    %46 = vector.load %arg11[%c0_24, %c0_25] : memref<1x32xf32, #tpu.memory_space<vmem>>, vector<1x32xf32>
    %47 = vector.broadcast %46 : vector<1x32xf32> to vector<64x32xf32>
    %48 = arith.addf %45, %47 : vector<64x32xf32>
    %c0_26 = arith.constant 0 : index
    %c0_27 = arith.constant 0 : index
    %c0_28 = arith.constant 0 : index
    %49 = vector.load %arg7[%c0_26, %c0_27, %c0_28] : memref<1x8x32xf32, #tpu.memory_space<vmem>>, vector<1x8x32xf32>
    %50 = vector.shape_cast %49 : vector<1x8x32xf32> to vector<8x32xf32>
    %51 = vector.shape_cast %50 : vector<8x32xf32> to vector<8x1x32xf32>
    %c0_29 = arith.constant 0 : index
    %c0_30 = arith.constant 0 : index
    %c0_31 = arith.constant 0 : index
    %52 = vector.load %arg6[%c0_29, %c0_30, %c0_31] : memref<1x8x32xf32, #tpu.memory_space<vmem>>, vector<1x8x32xf32>
    %53 = vector.shape_cast %52 : vector<1x8x32xf32> to vector<8x32xf32>
    %54 = vector.shape_cast %53 : vector<8x32xf32> to vector<1x8x32xf32>
    %55 = vector.broadcast %51 : vector<8x1x32xf32> to vector<8x8x32xf32>
    %56 = vector.broadcast %54 : vector<1x8x32xf32> to vector<8x8x32xf32>
    %57 = arith.addf %55, %56 : vector<8x8x32xf32>
    %cst_32 = arith.constant 0.000000e+00 : f32
    %58 = vector.broadcast %cst_32 : f32 to vector<8x8x32xf32>
    %59 = arith.maximumf %57, %58 : vector<8x8x32xf32>
    %60 = vector.broadcast %cst_32 : f32 to vector<8x8x32xf32>
    %61 = arith.subf %57, %60 : vector<8x8x32xf32>
    %62 = arith.cmpf one, %61, %61 : vector<8x8x32xf32>
    %63 = vector.broadcast %cst_32 : f32 to vector<8x8x32xf32>
    %64 = arith.addf %57, %63 : vector<8x8x32xf32>
    %65 = math.absf %61 : vector<8x8x32xf32>
    %cst_33 = arith.constant 0.000000e+00 : f32
    %66 = vector.broadcast %cst_33 : f32 to vector<8x8x32xf32>
    %67 = arith.subf %66, %65 : vector<8x8x32xf32>
    %68 = math.exp %67 : vector<8x8x32xf32>
    %69 = math.log1p %68 : vector<8x8x32xf32>
    %70 = arith.addf %59, %69 : vector<8x8x32xf32>
    %71 = arith.select %62, %64, %70 : vector<8x8x32xi1>, vector<8x8x32xf32>
    %cst_34 = arith.constant 0.693147182 : f32
    %72 = vector.broadcast %cst_34 : f32 to vector<8x8x32xf32>
    %73 = arith.subf %71, %72 : vector<8x8x32xf32>
    %74 = arith.truncf %73 : vector<8x8x32xf32> to vector<8x8x32xbf16>
    %75 = vector.shape_cast %74 : vector<8x8x32xbf16> to vector<64x32xbf16>
    %c0_35 = arith.constant 0 : index
    %c0_36 = arith.constant 0 : index
    %76 = vector.load %arg12[%c0_35, %c0_36] : memref<32x32xbf16, #tpu.memory_space<vmem>>, vector<32x32xbf16>
    %cst_37 = arith.constant dense<0.000000e+00> : vector<64x32xf32>
    %77 = tpu.matmul %75, %76, %cst_37 {dimension_numbers = #tpu.dot_dimension_numbers<[1], [0], [0], [1], [0, 0, 1, 1], [], []>} : vector<64x32xbf16>, vector<32x32xbf16>, vector<64x32xf32> -> vector<64x32xf32>
    %c0_38 = arith.constant 0 : index
    %c0_39 = arith.constant 0 : index
    %78 = vector.load %arg13[%c0_38, %c0_39] : memref<1x32xf32, #tpu.memory_space<vmem>>, vector<1x32xf32>
    %79 = vector.broadcast %78 : vector<1x32xf32> to vector<64x32xf32>
    %80 = arith.addf %77, %79 : vector<64x32xf32>
    %81 = arith.mulf %48, %80 : vector<64x32xf32>
    %82 = vector.shape_cast %81 : vector<64x32xf32> to vector<8x8x32xf32>
    %c0_40 = arith.constant 0 : index
    %c0_41 = arith.constant 0 : index
    %c0_42 = arith.constant 0 : index
    %83 = vector.load %arg14[%c0_40, %c0_41, %c0_42] : memref<1x8x32xf32, #tpu.memory_space<vmem>>, vector<1x8x32xf32>
    %84 = vector.shape_cast %83 : vector<1x8x32xf32> to vector<8x32xf32>
    %85 = vector.shape_cast %18 : vector<8x8xf32> to vector<8x8x1xf32>
    %86 = vector.broadcast %85 : vector<8x8x1xf32> to vector<8x8x32xf32>
    %87 = arith.mulf %86, %82 : vector<8x8x32xf32>
    %cst_43 = arith.constant dense<0.000000e+00> : vector<8x32xf32>
    %88 = vector.multi_reduction <add>, %87, %cst_43 [1] : vector<8x8x32xf32> to vector<8x32xf32>
    %89 = arith.addf %84, %88 : vector<8x32xf32>
    %c0_44 = arith.constant 0 : index
    %c0_45 = arith.constant 0 : index
    %c0_46 = arith.constant 0 : index
    %90 = vector.load %arg14[%c0_44, %c0_45, %c0_46] : memref<1x8x32xf32, #tpu.memory_space<vmem>>, vector<1x8x32xf32>
    %91 = vector.shape_cast %90 : vector<1x8x32xf32> to vector<8x32xf32>
    %92 = vector.shape_cast %89 : vector<8x32xf32> to vector<1x8x32xf32>
    tpu.vector_store %arg14[%c0_44, %c0_45, %c0_46], %92 {strides = array<i32>} : memref<1x8x32xf32, #tpu.memory_space<vmem>>, vector<1x8x32xf32>,
    return
  }
  func.func @transform_0(%arg0: i32, %arg1: i32, %arg2: i32) -> (i32, i32, i32, i32) {
    %c0_i32 = arith.constant 0 : i32
    %c0_i32_0 = arith.constant 0 : i32
    return %arg0, %arg1, %arg2, %c0_i32 : i32, i32, i32, i32
  }
  func.func @transform_1(%arg0: i32, %arg1: i32, %arg2: i32) -> (i32, i32, i32) {
    %c0_i32 = arith.constant 0 : i32
    return %arg0, %arg1, %arg2 : i32, i32, i32
  }
  func.func @transform_2(%arg0: i32, %arg1: i32, %arg2: i32) -> (i32, i32, i32) {
    %c0_i32 = arith.constant 0 : i32
    return %arg0, %arg1, %arg2 : i32, i32, i32
  }
  func.func @transform_3(%arg0: i32, %arg1: i32, %arg2: i32) -> (i32, i32, i32) {
    %c0_i32 = arith.constant 0 : i32
    %c0_i32_0 = arith.constant 0 : i32
    return %arg0, %arg2, %c0_i32 : i32, i32, i32
  }
  func.func @transform_4(%arg0: i32, %arg1: i32, %arg2: i32) -> (i32, i32, i32) {
    %c0_i32 = arith.constant 0 : i32
    %c0_i32_0 = arith.constant 0 : i32
    return %arg0, %arg1, %c0_i32 : i32, i32, i32
  }
  func.func @transform_5(%arg0: i32, %arg1: i32, %arg2: i32) -> (i32, i32) {
    %c0_i32 = arith.constant 0 : i32
    %c0_i32_0 = arith.constant 0 : i32
    %c0_i32_1 = arith.constant 0 : i32
    return %c0_i32, %c0_i32_0 : i32, i32
  }
  func.func @transform_6(%arg0: i32, %arg1: i32, %arg2: i32) -> (i32, i32) {
    %c0_i32 = arith.constant 0 : i32
    %c0_i32_0 = arith.constant 0 : i32
    %c0_i32_1 = arith.constant 0 : i32
    return %c0_i32, %c0_i32_0 : i32, i32
  }
  func.func @transform_7(%arg0: i32, %arg1: i32, %arg2: i32) -> (i32, i32) {
    %c0_i32 = arith.constant 0 : i32
    %c0_i32_0 = arith.constant 0 : i32
    %c0_i32_1 = arith.constant 0 : i32
    return %c0_i32, %c0_i32_0 : i32, i32
  }
  func.func @transform_8(%arg0: i32, %arg1: i32, %arg2: i32) -> (i32, i32) {
    %c0_i32 = arith.constant 0 : i32
    %c0_i32_0 = arith.constant 0 : i32
    %c0_i32_1 = arith.constant 0 : i32
    return %c0_i32, %c0_i32_0 : i32, i32
  }
  func.func @transform_9(%arg0: i32, %arg1: i32, %arg2: i32) -> (i32, i32) {
    %c0_i32 = arith.constant 0 : i32
    %c0_i32_0 = arith.constant 0 : i32
    %c0_i32_1 = arith.constant 0 : i32
    return %c0_i32, %c0_i32_0 : i32, i32
  }
  func.func @transform_10(%arg0: i32, %arg1: i32, %arg2: i32) -> (i32, i32) {
    %c0_i32 = arith.constant 0 : i32
    %c0_i32_0 = arith.constant 0 : i32
    %c0_i32_1 = arith.constant 0 : i32
    return %c0_i32, %c0_i32_0 : i32, i32
  }
  func.func @transform_11(%arg0: i32, %arg1: i32, %arg2: i32) -> (i32, i32, i32) {
    %c0_i32 = arith.constant 0 : i32
    %c0_i32_0 = arith.constant 0 : i32
    return %arg0, %arg1, %c0_i32 : i32, i32, i32
  }
}

</mosaic_0001>

<llo_original>
// kernel: tpu_custom_call.1
$region0: #{tpu_custom_call.1}
  #allocation0 [shape = 'u32[]', space=smem, size = 0x4, offset = 0x4, fixed_abs, tag = 'smem constant byte address 0x4 - core index']
  #allocation1 [shape = 'u32[144,128]{1,0:T(1,128)}', space=vmem, size = 0x12000, scoped, tag = 'internal scratch']
  %s0 = inlined_call_operand.hbm [shape: bf16[2,8,8,20], index: 0, kind: input, shape index: {}]
  %s1 = inlined_call_operand.hbm [shape: f32[2,8,8], index: 1, kind: input, shape index: {}]
  %s2 = inlined_call_operand.hbm [shape: f32[2,8,8], index: 2, kind: input, shape index: {}]
  %s3 = inlined_call_operand.hbm [shape: f32[2,8,32], index: 3, kind: input, shape index: {}]
  %s4 = inlined_call_operand.hbm [shape: f32[2,8,32], index: 4, kind: input, shape index: {}]
  %s5 = inlined_call_operand.hbm [shape: bf16[20,32], index: 5, kind: input, shape index: {}]
  %s6 = inlined_call_operand.hbm [shape: f32[1,32], index: 6, kind: input, shape index: {}]
  %s7 = inlined_call_operand.hbm [shape: bf16[32,32], index: 7, kind: input, shape index: {}]
  %s8 = inlined_call_operand.hbm [shape: f32[1,32], index: 8, kind: input, shape index: {}]
  %s9 = inlined_call_operand.vmem [shape: bf16[32,32], index: 9, kind: input, shape index: {}]
  %s10 = inlined_call_operand.vmem [shape: f32[1,32], index: 10, kind: input, shape index: {}]
  %s11 = inlined_call_operand.hbm [shape: f32[2,8,32], index: 11, kind: output, shape index: {}]
  %s12 = sld [smem:[#allocation0]]
  $region117: #{tpu_custom_call.1} parent=0
    _
  %s14 = ssub.s32 1, %s12
  %s15 = scalar_select 0, %s14, %s12
  $region1: #{tpu_custom_call.1} parent=0
    #allocation2 [shape = 'u8[32768]{0}', space=vmem, size = 0x8000, scoped, tag = 'input window, operand 0']
    #allocation3 [shape = 's32[2]{0}', space=sflag, size = 0x8, scoped, tag = 'scoped memory for tpu_custom_call.1']
    #allocation4 [shape = 's32[2]{0}', space=sflag, size = 0x8, scoped, tag = 'scoped memory for tpu_custom_call.1']
    #allocation5 [shape = 'u8[8192]{0}', space=vmem, size = 0x2000, scoped, tag = 'input window, operand 1']
    #allocation6 [shape = 's32[2]{0}', space=sflag, size = 0x8, scoped, tag = 'scoped memory for tpu_custom_call.1']
    #allocation7 [shape = 'u8[8192]{0}', space=vmem, size = 0x2000, scoped, tag = 'input window, operand 2']
    #allocation8 [shape = 'u8[8192]{0}', space=vmem, size = 0x2000, scoped, tag = 'input window, operand 3']
    #allocation9 [shape = 's32[2]{0}', space=sflag, size = 0x8, scoped, tag = 'scoped memory for tpu_custom_call.1']
    #allocation10 [shape = 'u8[8192]{0}', space=vmem, size = 0x2000, scoped, tag = 'input window, operand 4']
    #allocation11 [shape = 'u8[6144]{0}', space=vmem, size = 0x1800, scoped, tag = 'input window, operand 5, single buffered']
    #allocation12 [shape = 's32[1]{0}', space=sflag, size = 0x4, scoped, tag = 'scoped memory for tpu_custom_call.1']
    #allocation13 [shape = 'u8[512]{0}', space=vmem, size = 0x400, scoped, tag = 'input window, operand 6, single buffered']
    #allocation14 [shape = 'u8[8192]{0}', space=vmem, size = 0x2000, scoped, tag = 'input window, operand 7, single buffered']
    #allocation15 [shape = 's32[1]{0}', space=sflag, size = 0x4, scoped, tag = 'scoped memory for tpu_custom_call.1']
    #allocation16 [shape = 'u8[512]{0}', space=vmem, size = 0x400, scoped, tag = 'input window, operand 8, single buffered']
    #allocation17 [shape = 'u8[8192]{0}', space=vmem, size = 0x2000, scoped, tag = 'output window, operand 0']
    %16 = vsyncpa [#allocation3], 0
    %s17 = scalar_lea.sflag [#allocation3], 1
    %18 = vsyncpa %s17, 0
    %19 = vsyncpa [#allocation6], 0
    %s20 = scalar_lea.sflag [#allocation6], 1
    %21 = vsyncpa %s20, 0
    %22 = vsyncpa [#allocation9], 0
    %s23 = scalar_lea.sflag [#allocation9], 1
    %24 = vsyncpa %s23, 0
    %25 = vsyncpa [#allocation12], 0
    %26 = vsyncpa [#allocation15], 0
    %27 = vsyncpa [#allocation4], 0
    %s28 = scalar_lea.sflag [#allocation4], 1
    %29 = vsyncpa %s28, 0
    loop: start=0, step=1, limit=4
    $region2: #{tpu_custom_call.1} parent=1 // loop_pre_header
      _
    $region3: #{tpu_custom_call.1} parent=1 // loop_header
      %s31 = sphi 0, %s35
      %p32 = scmp.ge.s32.totalorder %s31, 4
      %s38 = sphi 0, %s57
      %s39 = sphi 0, %s53
      %s40 = sphi 0, %s49
      %s41 = sphi 0, %s38
      %s42 = sphi 0, %s39
      %s43 = sphi 0, %s40
      %s44 = sphi 0, %s41
      %s45 = sphi 0, %s42
      %s46 = sphi 0, %s43
      %s64 = sphi 0, %s66
      %s67 = sphi 0, %s64
      %s68 = sphi 0, %s67
      %s84 = sphi 0, %s68
      %s94 = sphi 0, %s96
      %s97 = sphi 0, %s94
      %s98 = sphi 0, %s97
      %s114 = sphi 0, %s98
      %s124 = sphi 0, %s126
      %s127 = sphi 0, %s124
      %s128 = sphi 0, %s127
      %s144 = sphi 0, %s128
      %s152 = sphi 0, %s154
      %s155 = sphi 0, %s152
      %s156 = sphi 0, %s155
      %s172 = sphi 0, %s156
      %s180 = sphi 0, %s182
      %s183 = sphi 0, %s180
      %s184 = sphi 0, %s183
      %s200 = sphi 0, %s184
      %s204 = sphi 0, %s204
      %s206 = sphi 0, %s204
      %s207 = sphi 0, %s206
      %s221 = sphi 0, %s207
      %s225 = sphi 0, %s225
      %s227 = sphi 0, %s225
      %s228 = sphi 0, %s227
      %s242 = sphi 0, %s228
      %s246 = sphi 0, %s246
      %s248 = sphi 0, %s246
      %s249 = sphi 0, %s248
      %s263 = sphi 0, %s249
      %s267 = sphi 0, %s267
      %s269 = sphi 0, %s267
      %s270 = sphi 0, %s269
      %s284 = sphi 0, %s270
      %s288 = sphi 0, %s288
      %s290 = sphi 0, %s288
      %s291 = sphi 0, %s290
      %s305 = sphi 0, %s291
      %s309 = sphi 0, %s309
      %s311 = sphi 0, %s309
      %s312 = sphi 0, %s311
      %s326 = sphi 0, %s312
      %s334 = sphi 0, %s336
      %s337 = sphi 0, %s334
      %s338 = sphi 0, %s337
      %s354 = sphi 0, %s338
    $region4: #{tpu_custom_call.1} parent=1 // loop_header_branch
      %34 = sbr.rel (%p32) target = $region8
    $region5: #{tpu_custom_call.1} parent=1 // loop_body
      %s36 = ssub.s32 %s31, 1
      %s37 = ssub.s32 %s31, 2
      %s47 = sadd.s32 1, %s40
      %p48 = scmp.ge.s32.totalorder %s47, 1
      %s49 = scalar_select %p48, 0, %s47
      %s50 = sadd.s32 1, %s39
      %s51 = scalar_select %p48, %s50, %s39
      %p52 = scmp.ge.s32.totalorder %s51, 1
      %s53 = scalar_select %p52, 0, %s51
      %s54 = sadd.s32 1, %s38
      %s55 = scalar_select %p52, %s54, %s38
      %p56 = scmp.ge.s32.totalorder %s55, 2
      %s57 = scalar_select %p56, 0, %s55
      %s58 = ssub.s32 %s38, %s57
      %s59 = ssub.s32 %s39, %s53
      %s60 = sor.u32 %s58, %s59
      %s61 = ssub.s32 %s40, %s49
      %s62 = sor.u32 %s60, %s61
      %p63 = scmp.eq.s32.totalorder %s62, 0
      %s65 = sadd.s32 %s64, 1
      %s66 = scalar_select %p63, %s64, %s65
      %p69 = pneg %p63
      %p70 = scmp.eq.s32.totalorder %s31, 1
      %p71 = por %p69, %p70
      %p72 = scmp.ne.s32.totalorder %s64, %s67
      %p73 = scmp.eq.s32.totalorder %s31, 0
      %p74 = por %p72, %p73
      %p75 = scmp.ne.s32.totalorder %s64, %s67
      %p76 = scmp.eq.s32.totalorder %s36, 1
      %p77 = por %p75, %p76
      %p78 = scmp.ne.s32.totalorder %s67, %s68
      %p79 = scmp.eq.s32.totalorder %s36, 0
      %p80 = por %p78, %p79
      %p81 = scmp.ne.s32.totalorder %s67, %s68
      %p82 = scmp.eq.s32.totalorder %s37, 1
      %p83 = por %p81, %p82
      %p85 = scmp.ne.s32.totalorder %s68, %s84
      %p86 = scmp.eq.s32.totalorder %s37, 0
      %p87 = por %p85, %p86
      %s88 = ssub.s32 %s38, %s57
      %s89 = ssub.s32 %s39, %s53
      %s90 = sor.u32 %s88, %s89
      %s91 = ssub.s32 %s40, %s49
      %s92 = sor.u32 %s90, %s91
      %p93 = scmp.eq.s32.totalorder %s92, 0
      %s95 = sadd.s32 %s94, 1
      %s96 = scalar_select %p93, %s94, %s95
      %p99 = pneg %p93
      %p100 = scmp.eq.s32.totalorder %s31, 1
      %p101 = por %p99, %p100
      %p102 = scmp.ne.s32.totalorder %s94, %s97
      %p103 = scmp.eq.s32.totalorder %s31, 0
      %p104 = por %p102, %p103
      %p105 = scmp.ne.s32.totalorder %s94, %s97
      %p106 = scmp.eq.s32.totalorder %s36, 1
      %p107 = por %p105, %p106
      %p108 = scmp.ne.s32.totalorder %s97, %s98
      %p109 = scmp.eq.s32.totalorder %s36, 0
      %p110 = por %p108, %p109
      %p111 = scmp.ne.s32.totalorder %s97, %s98
      %p112 = scmp.eq.s32.totalorder %s37, 1
      %p113 = por %p111, %p112
      %p115 = scmp.ne.s32.totalorder %s98, %s114
      %p116 = scmp.eq.s32.totalorder %s37, 0
      %p117 = por %p115, %p116
      %s118 = ssub.s32 %s38, %s57
      %s119 = ssub.s32 %s39, %s53
      %s120 = sor.u32 %s118, %s119
      %s121 = ssub.s32 %s40, %s49
      %s122 = sor.u32 %s120, %s121
      %p123 = scmp.eq.s32.totalorder %s122, 0
      %s125 = sadd.s32 %s124, 1
      %s126 = scalar_select %p123, %s124, %s125
      %p129 = pneg %p123
      %p130 = scmp.eq.s32.totalorder %s31, 1
      %p131 = por %p129, %p130
      %p132 = scmp.ne.s32.totalorder %s124, %s127
      %p133 = scmp.eq.s32.totalorder %s31, 0
      %p134 = por %p132, %p133
      %p135 = scmp.ne.s32.totalorder %s124, %s127
      %p136 = scmp.eq.s32.totalorder %s36, 1
      %p137 = por %p135, %p136
      %p138 = scmp.ne.s32.totalorder %s127, %s128
      %p139 = scmp.eq.s32.totalorder %s36, 0
      %p140 = por %p138, %p139
      %p141 = scmp.ne.s32.totalorder %s127, %s128
      %p142 = scmp.eq.s32.totalorder %s37, 1
      %p143 = por %p141, %p142
      %p145 = scmp.ne.s32.totalorder %s128, %s144
      %p146 = scmp.eq.s32.totalorder %s37, 0
      %p147 = por %p145, %p146
      %s148 = ssub.s32 %s38, %s57
      %s149 = ssub.s32 %s40, %s49
      %s150 = sor.u32 %s148, %s149
      %p151 = scmp.eq.s32.totalorder %s150, 0
      %s153 = sadd.s32 %s152, 1
      %s154 = scalar_select %p151, %s152, %s153
      %p157 = pneg %p151
      %p158 = scmp.eq.s32.totalorder %s31, 1
      %p159 = por %p157, %p158
      %p160 = scmp.ne.s32.totalorder %s152, %s155
      %p161 = scmp.eq.s32.totalorder %s31, 0
      %p162 = por %p160, %p161
      %p163 = scmp.ne.s32.totalorder %s152, %s155
      %p164 = scmp.eq.s32.totalorder %s36, 1
      %p165 = por %p163, %p164
      %p166 = scmp.ne.s32.totalorder %s155, %s156
      %p167 = scmp.eq.s32.totalorder %s36, 0
      %p168 = por %p166, %p167
      %p169 = scmp.ne.s32.totalorder %s155, %s156
      %p170 = scmp.eq.s32.totalorder %s37, 1
      %p171 = por %p169, %p170
      %p173 = scmp.ne.s32.totalorder %s156, %s172
      %p174 = scmp.eq.s32.totalorder %s37, 0
      %p175 = por %p173, %p174
      %s176 = ssub.s32 %s38, %s57
      %s177 = ssub.s32 %s39, %s53
      %s178 = sor.u32 %s176, %s177
      %p179 = scmp.eq.s32.totalorder %s178, 0
      %s181 = sadd.s32 %s180, 1
      %s182 = scalar_select %p179, %s180, %s181
      %p185 = pneg %p179
      %p186 = scmp.eq.s32.totalorder %s31, 1
      %p187 = por %p185, %p186
      %p188 = scmp.ne.s32.totalorder %s180, %s183
      %p189 = scmp.eq.s32.totalorder %s31, 0
      %p190 = por %p188, %p189
      %p191 = scmp.ne.s32.totalorder %s180, %s183
      %p192 = scmp.eq.s32.totalorder %s36, 1
      %p193 = por %p191, %p192
      %p194 = scmp.ne.s32.totalorder %s183, %s184
      %p195 = scmp.eq.s32.totalorder %s36, 0
      %p196 = por %p194, %p195
      %p197 = scmp.ne.s32.totalorder %s183, %s184
      %p198 = scmp.eq.s32.totalorder %s37, 1
      %p199 = por %p197, %p198
      %p201 = scmp.ne.s32.totalorder %s184, %s200
      %p202 = scmp.eq.s32.totalorder %s37, 0
      %p203 = por %p201, %p202
      %s205 = sadd.s32 %s204, 1
      %p208 = scmp.eq.s32.totalorder %s31, 1
      %p209 = scmp.ne.s32.totalorder %s204, %s206
      %p210 = scmp.eq.s32.totalorder %s31, 0
      %p211 = por %p209, %p210
      %p212 = scmp.ne.s32.totalorder %s204, %s206
      %p213 = scmp.eq.s32.totalorder %s36, 1
      %p214 = por %p212, %p213
      %p215 = scmp.ne.s32.totalorder %s206, %s207
      %p216 = scmp.eq.s32.totalorder %s36, 0
      %p217 = por %p215, %p216
      %p218 = scmp.ne.s32.totalorder %s206, %s207
      %p219 = scmp.eq.s32.totalorder %s37, 1
      %p220 = por %p218, %p219
      %p222 = scmp.ne.s32.totalorder %s207, %s221
      %p223 = scmp.eq.s32.totalorder %s37, 0
      %p224 = por %p222, %p223
      %s226 = sadd.s32 %s225, 1
      %p229 = scmp.eq.s32.totalorder %s31, 1
      %p230 = scmp.ne.s32.totalorder %s225, %s227
      %p231 = scmp.eq.s32.totalorder %s31, 0
      %p232 = por %p230, %p231
      %p233 = scmp.ne.s32.totalorder %s225, %s227
      %p234 = scmp.eq.s32.totalorder %s36, 1
      %p235 = por %p233, %p234
      %p236 = scmp.ne.s32.totalorder %s227, %s228
      %p237 = scmp.eq.s32.totalorder %s36, 0
      %p238 = por %p236, %p237
      %p239 = scmp.ne.s32.totalorder %s227, %s228
      %p240 = scmp.eq.s32.totalorder %s37, 1
      %p241 = por %p239, %p240
      %p243 = scmp.ne.s32.totalorder %s228, %s242
      %p244 = scmp.eq.s32.totalorder %s37, 0
      %p245 = por %p243, %p244
      %s247 = sadd.s32 %s246, 1
      %p250 = scmp.eq.s32.totalorder %s31, 1
      %p251 = scmp.ne.s32.totalorder %s246, %s248
      %p252 = scmp.eq.s32.totalorder %s31, 0
      %p253 = por %p251, %p252
      %p254 = scmp.ne.s32.totalorder %s246, %s248
      %p255 = scmp.eq.s32.totalorder %s36, 1
      %p256 = por %p254, %p255
      %p257 = scmp.ne.s32.totalorder %s248, %s249
      %p258 = scmp.eq.s32.totalorder %s36, 0
      %p259 = por %p257, %p258
      %p260 = scmp.ne.s32.totalorder %s248, %s249
      %p261 = scmp.eq.s32.totalorder %s37, 1
      %p262 = por %p260, %p261
      %p264 = scmp.ne.s32.totalorder %s249, %s263
      %p265 = scmp.eq.s32.totalorder %s37, 0
      %p266 = por %p264, %p265
      %s268 = sadd.s32 %s267, 1
      %p271 = scmp.eq.s32.totalorder %s31, 1
      %p272 = scmp.ne.s32.totalorder %s267, %s269
      %p273 = scmp.eq.s32.totalorder %s31, 0
      %p274 = por %p272, %p273
      %p275 = scmp.ne.s32.totalorder %s267, %s269
      %p276 = scmp.eq.s32.totalorder %s36, 1
      %p277 = por %p275, %p276
      %p278 = scmp.ne.s32.totalorder %s269, %s270
      %p279 = scmp.eq.s32.totalorder %s36, 0
      %p280 = por %p278, %p279
      %p281 = scmp.ne.s32.totalorder %s269, %s270
      %p282 = scmp.eq.s32.totalorder %s37, 1
      %p283 = por %p281, %p282
      %p285 = scmp.ne.s32.totalorder %s270, %s284
      %p286 = scmp.eq.s32.totalorder %s37, 0
      %p287 = por %p285, %p286
      %s289 = sadd.s32 %s288, 1
      %p292 = scmp.eq.s32.totalorder %s31, 1
      %p293 = scmp.ne.s32.totalorder %s288, %s290
      %p294 = scmp.eq.s32.totalorder %s31, 0
      %p295 = por %p293, %p294
      %p296 = scmp.ne.s32.totalorder %s288, %s290
      %p297 = scmp.eq.s32.totalorder %s36, 1
      %p298 = por %p296, %p297
      %p299 = scmp.ne.s32.totalorder %s290, %s291
      %p300 = scmp.eq.s32.totalorder %s36, 0
      %p301 = por %p299, %p300
      %p302 = scmp.ne.s32.totalorder %s290, %s291
      %p303 = scmp.eq.s32.totalorder %s37, 1
      %p304 = por %p302, %p303
      %p306 = scmp.ne.s32.totalorder %s291, %s305
      %p307 = scmp.eq.s32.totalorder %s37, 0
      %p308 = por %p306, %p307
      %s310 = sadd.s32 %s309, 1
      %p313 = scmp.eq.s32.totalorder %s31, 1
      %p314 = scmp.ne.s32.totalorder %s309, %s311
      %p315 = scmp.eq.s32.totalorder %s31, 0
      %p316 = por %p314, %p315
      %p317 = scmp.ne.s32.totalorder %s309, %s311
      %p318 = scmp.eq.s32.totalorder %s36, 1
      %p319 = por %p317, %p318
      %p320 = scmp.ne.s32.totalorder %s311, %s312
      %p321 = scmp.eq.s32.totalorder %s36, 0
      %p322 = por %p320, %p321
      %p323 = scmp.ne.s32.totalorder %s311, %s312
      %p324 = scmp.eq.s32.totalorder %s37, 1
      %p325 = por %p323, %p324
      %p327 = scmp.ne.s32.totalorder %s312, %s326
      %p328 = scmp.eq.s32.totalorder %s37, 0
      %p329 = por %p327, %p328
      %s330 = ssub.s32 %s38, %s57
      %s331 = ssub.s32 %s39, %s53
      %s332 = sor.u32 %s330, %s331
      %p333 = scmp.eq.s32.totalorder %s332, 0
      %s335 = sadd.s32 %s334, 1
      %s336 = scalar_select %p333, %s334, %s335
      %p339 = pneg %p333
      %p340 = scmp.eq.s32.totalorder %s31, 1
      %p341 = por %p339, %p340
      %p342 = scmp.ne.s32.totalorder %s334, %s337
      %p343 = scmp.eq.s32.totalorder %s31, 0
      %p344 = por %p342, %p343
      %p345 = scmp.ne.s32.totalorder %s334, %s337
      %p346 = scmp.eq.s32.totalorder %s36, 1
      %p347 = por %p345, %p346
      %p348 = scmp.ne.s32.totalorder %s337, %s338
      %p349 = scmp.eq.s32.totalorder %s36, 0
      %p350 = por %p348, %p349
      %p351 = scmp.ne.s32.totalorder %s337, %s338
      %p352 = scmp.eq.s32.totalorder %s37, 1
      %p353 = por %p351, %p352
      %p355 = scmp.ne.s32.totalorder %s338, %s354
      %p356 = scmp.eq.s32.totalorder %s37, 0
      %p357 = por %p355, %p356
      %p358 = scmp.le.s32.totalorder 1, %s31
      %p359 = scmp.lt.s32.totalorder %s31, 3
      %p360 = pnand %p358, %p359
      %p361 = pneg %p360
      // Predicated region
      $region9: #{tpu_custom_call.1} parent=5 // pred_check
        _
      $region10: #{tpu_custom_call.1} parent=5 // pred_check_branch
        %363 = sbr.rel (%p360) target = $region12
      $region11: #{tpu_custom_call.1} parent=5 // pred_region
        %s364 = ssub.s32 %s31, 1
        // Predicated region
        $region13: #{tpu_custom_call.1} parent=11 // pred_check
          %p365 = pneg %p217
        $region14: #{tpu_custom_call.1} parent=11 // pred_check_branch
          %367 = sbr.rel (%p365) target = $region16
        $region15: #{tpu_custom_call.1} parent=11 // pred_region
          %s369 = ssub.s32 192, 192
          %370 = vsyncadd [#allocation12], %s369
          %s371 = sshll.u32 [#allocation11], 4
          %s372 = int_to_ptr.vmem [resolvable:$true] %s371
          %377 = dma.hbm_to_vmem [thread:$0]  %s5, 192, %s372, [#allocation12], 64, 64, 4
        $region16: #{tpu_custom_call.1} parent=11 // pred_fallthru
          _
        // Predicated region
        $region17: #{tpu_custom_call.1} parent=11 // pred_check
          %p378 = pneg %p238
        $region18: #{tpu_custom_call.1} parent=11 // pred_check_branch
          %380 = sbr.rel (%p378) target = $region20
        $region19: #{tpu_custom_call.1} parent=11 // pred_region
          %s382 = ssub.s32 16, 16
          %383 = vsyncadd [#allocation12], %s382
          %s385 = sshll.u32 [#allocation13], 4
          %s386 = int_to_ptr.vmem [resolvable:$true] %s385
          %388 = dma.hbm_to_vmem [thread:$0]  %s6, 16, %s386, [#allocation12]
        $region20: #{tpu_custom_call.1} parent=11 // pred_fallthru
          _
        // Predicated region
        $region21: #{tpu_custom_call.1} parent=11 // pred_check
          %p389 = pneg %p259
        $region22: #{tpu_custom_call.1} parent=11 // pred_check_branch
          %391 = sbr.rel (%p389) target = $region24
        $region23: #{tpu_custom_call.1} parent=11 // pred_region
          %s393 = ssub.s32 256, 256
          %394 = vsyncadd [#allocation15], %s393
          %s395 = sshll.u32 [#allocation14], 4
          %s396 = int_to_ptr.vmem [resolvable:$true] %s395
          %401 = dma.hbm_to_vmem [thread:$0]  %s7, 256, %s396, [#allocation15], 64, 64, 4
        $region24: #{tpu_custom_call.1} parent=11 // pred_fallthru
          _
        // Predicated region
        $region25: #{tpu_custom_call.1} parent=11 // pred_check
          %p402 = pneg %p280
        $region26: #{tpu_custom_call.1} parent=11 // pred_check_branch
          %404 = sbr.rel (%p402) target = $region28
        $region27: #{tpu_custom_call.1} parent=11 // pred_region
          %s406 = ssub.s32 16, 16
          %407 = vsyncadd [#allocation15], %s406
          %s409 = sshll.u32 [#allocation16], 4
          %s410 = int_to_ptr.vmem [resolvable:$true] %s409
          %412 = dma.hbm_to_vmem [thread:$0]  %s8, 16, %s410, [#allocation15]
        $region28: #{tpu_custom_call.1} parent=11 // pred_fallthru
          _
        // Predicated region
        $region29: #{tpu_custom_call.1} parent=11 // pred_check
          %p413 = pneg %p301
        $region30: #{tpu_custom_call.1} parent=11 // pred_check_branch
          %415 = sbr.rel (%p413) target = $region32
        $region31: #{tpu_custom_call.1} parent=11 // pred_region
          _
        $region32: #{tpu_custom_call.1} parent=11 // pred_fallthru
          _
        // Predicated region
        $region33: #{tpu_custom_call.1} parent=11 // pred_check
          %p416 = pneg %p322
        $region34: #{tpu_custom_call.1} parent=11 // pred_check_branch
          %418 = sbr.rel (%p416) target = $region36
        $region35: #{tpu_custom_call.1} parent=11 // pred_region
          _
        $region36: #{tpu_custom_call.1} parent=11 // pred_fallthru
          _
      $region12: #{tpu_custom_call.1} parent=5 // pred_fallthru
        _
      %p419 = scmp.lt.s32.totalorder %s31, 2
      // Predicated region
      $region37: #{tpu_custom_call.1} parent=5 // pred_check
        %p420 = pneg %p419
      $region38: #{tpu_custom_call.1} parent=5 // pred_check_branch
        %422 = sbr.rel (%p420) target = $region40
      $region39: #{tpu_custom_call.1} parent=5 // pred_region
        // Predicated region
        $region41: #{tpu_custom_call.1} parent=39 // pred_check
          %p423 = pneg %p74
        $region42: #{tpu_custom_call.1} parent=39 // pred_check_branch
          %425 = sbr.rel (%p423) target = $region44
        $region43: #{tpu_custom_call.1} parent=39 // pred_region
          %s426 = sand.u32 %s64, 1
          %s427 = scalar_lea.sflag [#allocation3], %s426
          %s428 = sand.u32 %s64, 1
          %s429 = smul.addr %s428, 32
          %s430 = scalar_lea.vmem [#allocation2], %s429
          %s431 = smul.u32 8, %s39
          %s433 = ssub.s32 512, 512
          %434 = vsyncadd %s427, %s433
          %s435 = sadd.s32 %s40, %s431
          %s436 = smul.addr %s38, 8
          %s437 = sadd.s32 %s435, %s436
          %s438 = smul.addr %s437, 64
          %s439 = scalar_lea.hbm %s0, %s438
          %s440 = sshll.u32 %s430, 4
          %s441 = int_to_ptr.vmem [resolvable:$true] %s440
          %446 = dma.hbm_to_vmem [thread:$0]  %s439, 512, %s441, %s427, 64, 64, 4
        $region44: #{tpu_custom_call.1} parent=39 // pred_fallthru
          _
        // Predicated region
        $region45: #{tpu_custom_call.1} parent=39 // pred_check
          %p447 = pneg %p104
        $region46: #{tpu_custom_call.1} parent=39 // pred_check_branch
          %449 = sbr.rel (%p447) target = $region48
        $region47: #{tpu_custom_call.1} parent=39 // pred_region
          %s450 = sand.u32 %s31, 1
          %s451 = scalar_lea.sflag [#allocation6], %s450
          %s452 = sand.u32 %s94, 1
          %s453 = smul.addr %s452, 8
          %s454 = scalar_lea.vmem [#allocation5], %s453
          %s456 = ssub.s32 128, 128
          %457 = vsyncadd %s451, %s456
          %s458 = sadd.s32 %s40, %s39
          %s459 = sadd.s32 %s458, %s38
          %s460 = smul.addr %s459, 128
          %s461 = scalar_lea.hbm %s1, %s460
          %s463 = sshll.u32 %s454, 4
          %s464 = int_to_ptr.vmem [resolvable:$true] %s463
          %466 = dma.hbm_to_vmem [thread:$0]  %s461, 128, %s464, %s451
        $region48: #{tpu_custom_call.1} parent=39 // pred_fallthru
          _
        // Predicated region
        $region49: #{tpu_custom_call.1} parent=39 // pred_check
          %p467 = pneg %p134
        $region50: #{tpu_custom_call.1} parent=39 // pred_check_branch
          %469 = sbr.rel (%p467) target = $region52
        $region51: #{tpu_custom_call.1} parent=39 // pred_region
          %s470 = sand.u32 %s31, 1
          %s471 = scalar_lea.sflag [#allocation6], %s470
          %s472 = sand.u32 %s124, 1
          %s473 = smul.addr %s472, 8
          %s474 = scalar_lea.vmem [#allocation7], %s473
          %s476 = ssub.s32 128, 128
          %477 = vsyncadd %s471, %s476
          %s478 = sadd.s32 %s40, %s39
          %s479 = sadd.s32 %s478, %s38
          %s480 = smul.addr %s479, 128
          %s481 = scalar_lea.hbm %s2, %s480
          %s483 = sshll.u32 %s474, 4
          %s484 = int_to_ptr.vmem [resolvable:$true] %s483
          %486 = dma.hbm_to_vmem [thread:$0]  %s481, 128, %s484, %s471
        $region52: #{tpu_custom_call.1} parent=39 // pred_fallthru
          _
        // Predicated region
        $region53: #{tpu_custom_call.1} parent=39 // pred_check
          %p487 = pneg %p162
        $region54: #{tpu_custom_call.1} parent=39 // pred_check_branch
          %489 = sbr.rel (%p487) target = $region56
        $region55: #{tpu_custom_call.1} parent=39 // pred_region
          %s490 = sand.u32 %s31, 1
          %s491 = scalar_lea.sflag [#allocation9], %s490
          %s492 = sand.u32 %s152, 1
          %s493 = smul.addr %s492, 8
          %s494 = scalar_lea.vmem [#allocation8], %s493
          %s496 = ssub.s32 128, 128
          %497 = vsyncadd %s491, %s496
          %s498 = sadd.s32 %s40, %s38
          %s499 = smul.addr %s498, 128
          %s500 = scalar_lea.hbm %s3, %s499
          %s502 = sshll.u32 %s494, 4
          %s503 = int_to_ptr.vmem [resolvable:$true] %s502
          %505 = dma.hbm_to_vmem [thread:$0]  %s500, 128, %s503, %s491
        $region56: #{tpu_custom_call.1} parent=39 // pred_fallthru
          _
        // Predicated region
        $region57: #{tpu_custom_call.1} parent=39 // pred_check
          %p506 = pneg %p190
        $region58: #{tpu_custom_call.1} parent=39 // pred_check_branch
          %508 = sbr.rel (%p506) target = $region60
        $region59: #{tpu_custom_call.1} parent=39 // pred_region
          %s509 = sand.u32 %s31, 1
          %s510 = scalar_lea.sflag [#allocation9], %s509
          %s511 = sand.u32 %s180, 1
          %s512 = smul.addr %s511, 8
          %s513 = scalar_lea.vmem [#allocation10], %s512
          %s515 = ssub.s32 128, 128
          %516 = vsyncadd %s510, %s515
          %s517 = sadd.s32 %s39, %s38
          %s518 = smul.addr %s517, 128
          %s519 = scalar_lea.hbm %s4, %s518
          %s521 = sshll.u32 %s513, 4
          %s522 = int_to_ptr.vmem [resolvable:$true] %s521
          %524 = dma.hbm_to_vmem [thread:$0]  %s519, 128, %s522, %s510
        $region60: #{tpu_custom_call.1} parent=39 // pred_fallthru
          _
      $region40: #{tpu_custom_call.1} parent=5 // pred_fallthru
        _
      %p525 = scmp.le.s32.totalorder 1, %s31
      %p526 = scmp.lt.s32.totalorder %s31, 3
      %p527 = pnand %p525, %p526
      %p528 = pneg %p527
      // Predicated region
      $region61: #{tpu_custom_call.1} parent=5 // pred_check
        _
      $region62: #{tpu_custom_call.1} parent=5 // pred_check_branch
        %530 = sbr.rel (%p527) target = $region64
      $region63: #{tpu_custom_call.1} parent=5 // pred_region
        %s531 = ssub.s32 %s31, 1
        %s532 = sand.u32 %s67, 1
        %s533 = scalar_lea.sflag [#allocation3], %s532
        %s534 = sand.u32 %s67, 1
        %s535 = smul.addr %s534, 32
        %s536 = scalar_lea.vmem [#allocation2], %s535
        // Predicated region
        $region65: #{tpu_custom_call.1} parent=63 // pred_check
          %p537 = pneg %p80
        $region66: #{tpu_custom_call.1} parent=63 // pred_check_branch
          %539 = sbr.rel (%p537) target = $region68
        $region67: #{tpu_custom_call.1} parent=63 // pred_region
          %540 = dma.done %s533, 512
        $region68: #{tpu_custom_call.1} parent=63 // pred_fallthru
          _
        %s541 = sand.u32 %s36, 1
        %s542 = scalar_lea.sflag [#allocation6], %s541
        %s543 = sand.u32 %s97, 1
        %s544 = smul.addr %s543, 8
        %s545 = scalar_lea.vmem [#allocation5], %s544
        // Predicated region
        $region69: #{tpu_custom_call.1} parent=63 // pred_check
          %p546 = pneg %p110
        $region70: #{tpu_custom_call.1} parent=63 // pred_check_branch
          %548 = sbr.rel (%p546) target = $region72
        $region71: #{tpu_custom_call.1} parent=63 // pred_region
          %549 = dma.done %s542, 128
        $region72: #{tpu_custom_call.1} parent=63 // pred_fallthru
          _
        %s550 = sand.u32 %s36, 1
        %s551 = scalar_lea.sflag [#allocation6], %s550
        %s552 = sand.u32 %s127, 1
        %s553 = smul.addr %s552, 8
        %s554 = scalar_lea.vmem [#allocation7], %s553
        // Predicated region
        $region73: #{tpu_custom_call.1} parent=63 // pred_check
          %p555 = pneg %p140
        $region74: #{tpu_custom_call.1} parent=63 // pred_check_branch
          %557 = sbr.rel (%p555) target = $region76
        $region75: #{tpu_custom_call.1} parent=63 // pred_region
          %558 = dma.done %s551, 128
        $region76: #{tpu_custom_call.1} parent=63 // pred_fallthru
          _
        %s559 = sand.u32 %s36, 1
        %s560 = scalar_lea.sflag [#allocation9], %s559
        %s561 = sand.u32 %s155, 1
        %s562 = smul.addr %s561, 8
        %s563 = scalar_lea.vmem [#allocation8], %s562
        // Predicated region
        $region77: #{tpu_custom_call.1} parent=63 // pred_check
          %p564 = pneg %p168
        $region78: #{tpu_custom_call.1} parent=63 // pred_check_branch
          %566 = sbr.rel (%p564) target = $region80
        $region79: #{tpu_custom_call.1} parent=63 // pred_region
          %567 = dma.done %s560, 128
        $region80: #{tpu_custom_call.1} parent=63 // pred_fallthru
          _
        %s568 = sand.u32 %s36, 1
        %s569 = scalar_lea.sflag [#allocation9], %s568
        %s570 = sand.u32 %s183, 1
        %s571 = smul.addr %s570, 8
        %s572 = scalar_lea.vmem [#allocation10], %s571
        // Predicated region
        $region81: #{tpu_custom_call.1} parent=63 // pred_check
          %p573 = pneg %p196
        $region82: #{tpu_custom_call.1} parent=63 // pred_check_branch
          %575 = sbr.rel (%p573) target = $region84
        $region83: #{tpu_custom_call.1} parent=63 // pred_region
          %576 = dma.done %s569, 128
        $region84: #{tpu_custom_call.1} parent=63 // pred_fallthru
          _
        // Predicated region
        $region85: #{tpu_custom_call.1} parent=63 // pred_check
          %p577 = pneg %p217
        $region86: #{tpu_custom_call.1} parent=63 // pred_check_branch
          %579 = sbr.rel (%p577) target = $region88
        $region87: #{tpu_custom_call.1} parent=63 // pred_region
          %580 = dma.done [#allocation12], 192
        $region88: #{tpu_custom_call.1} parent=63 // pred_fallthru
          _
        // Predicated region
        $region89: #{tpu_custom_call.1} parent=63 // pred_check
          %p581 = pneg %p238
        $region90: #{tpu_custom_call.1} parent=63 // pred_check_branch
          %583 = sbr.rel (%p581) target = $region92
        $region91: #{tpu_custom_call.1} parent=63 // pred_region
          %584 = dma.done [#allocation12], 16
        $region92: #{tpu_custom_call.1} parent=63 // pred_fallthru
          _
        // Predicated region
        $region93: #{tpu_custom_call.1} parent=63 // pred_check
          %p585 = pneg %p259
        $region94: #{tpu_custom_call.1} parent=63 // pred_check_branch
          %587 = sbr.rel (%p585) target = $region96
        $region95: #{tpu_custom_call.1} parent=63 // pred_region
          %588 = dma.done [#allocation15], 256
        $region96: #{tpu_custom_call.1} parent=63 // pred_fallthru
          _
        // Predicated region
        $region97: #{tpu_custom_call.1} parent=63 // pred_check
          %p589 = pneg %p280
        $region98: #{tpu_custom_call.1} parent=63 // pred_check_branch
          %591 = sbr.rel (%p589) target = $region100
        $region99: #{tpu_custom_call.1} parent=63 // pred_region
          %592 = dma.done [#allocation15], 16
        $region100: #{tpu_custom_call.1} parent=63 // pred_fallthru
          _
        %s593 = sand.u32 %s67, 1
        %s594 = scalar_lea.sflag [#allocation3], %s593
        %s595 = sand.u32 %s67, 1
        %s596 = smul.addr %s595, 32
        %s597 = scalar_lea.vmem [#allocation2], %s596
        %p598 = pneg %p80
        %p599 = pneg %p77
        %s600 = sand.u32 %s36, 1
        %s601 = scalar_lea.sflag [#allocation6], %s600
        %s602 = sand.u32 %s97, 1
        %s603 = smul.addr %s602, 8
        %s604 = scalar_lea.vmem [#allocation5], %s603
        %p605 = pneg %p110
        %p606 = pneg %p107
        %s607 = sand.u32 %s36, 1
        %s608 = scalar_lea.sflag [#allocation6], %s607
        %s609 = sand.u32 %s127, 1
        %s610 = smul.addr %s609, 8
        %s611 = scalar_lea.vmem [#allocation7], %s610
        %p612 = pneg %p140
        %p613 = pneg %p137
        %s614 = sand.u32 %s36, 1
        %s615 = scalar_lea.sflag [#allocation9], %s614
        %s616 = sand.u32 %s155, 1
        %s617 = smul.addr %s616, 8
        %s618 = scalar_lea.vmem [#allocation8], %s617
        %p619 = pneg %p168
        %p620 = pneg %p165
        %s621 = sand.u32 %s36, 1
        %s622 = scalar_lea.sflag [#allocation9], %s621
        %s623 = sand.u32 %s183, 1
        %s624 = smul.addr %s623, 8
        %s625 = scalar_lea.vmem [#allocation10], %s624
        %p626 = pneg %p196
        %p627 = pneg %p193
        %p628 = pneg %p217
        %p629 = pneg %p214
        %p630 = pneg %p238
        %p631 = pneg %p235
        %p632 = pneg %p259
        %p633 = pneg %p256
        %p634 = pneg %p280
        %p635 = pneg %p277
        %p636 = pneg %p301
        %p637 = pneg %p298
        %p638 = pneg %p322
        %p639 = pneg %p319
        %p640 = pneg %p350
        %p641 = pneg %p347
        %s642 = sand.u32 %s337, 1
        %s643 = scalar_lea.sflag [#allocation4], %s642
        %s644 = sand.u32 %s337, 1
        %s645 = smul.addr %s644, 8
        %s646 = scalar_lea.vmem [#allocation17], %s645
        %s647 = smul.u32 8, %s42
        %p649 = scmp.eq.s32.totalorder %s43, 0
        // Predicated region
        $region101: #{tpu_custom_call.1} parent=63 // pred_check
          %p650 = pneg %p649
        $region102: #{tpu_custom_call.1} parent=63 // pred_check_branch
          %652 = sbr.rel (%p650) target = $region104
        $region103: #{tpu_custom_call.1} parent=63 // pred_region
          %vm653 = vcmask 261120
          %654 = vst.msk [vmem:[%s646] sm:$0xff] %vm653, 0.0
        $region104: #{tpu_custom_call.1} parent=63 // pred_fallthru
          _
        %v655 = vld [vmem:[%s554] sm:$0xff]
        %v656 = vld [vmem:[%s545] sm:$0xff]
        %v657 = vsub.f32 %v656, 2.5
        %v658 = vmul.f32 %v657, 5.0
        %v659 = vxor.u32 %v658, 2147483648
        %v660 = vmul.f32 %v659, 1.442695
        %v661 = vpow.pop %v660
        %v662 = vadd.f32 %v661, 1.0
        %v663 = vrcp.pop %v662
        %v664 = vmul.f32 1.0, %v663
        %v665 = vsub.f32 1.0, %v664
        %v666 = vmul.f32 %v655, %v665
        %v667 = vld [vmem:[%s536] sm:$0xf]
        %v668 = vld [vmem:[%s536 + $0x4] sm:$0xf]
        %v669 = vld [vmem:[%s536 + $0x8] sm:$0xf]
        %v670 = vld [vmem:[%s536 + $0xc] sm:$0xf]
        %v671 = vld [vmem:[%s536 + $0x10] sm:$0xf]
        %v672 = vld [vmem:[%s536 + $0x14] sm:$0xf]
        %v673 = vld [vmem:[%s536 + $0x18] sm:$0xf]
        %v674 = vld [vmem:[%s536 + $0x1c] sm:$0xf]
        %v675 = vld [vmem:[#allocation11] sm:$0xf]
        %v676 = vld [vmem:[#allocation11 + $0x4] sm:$0xf]
        %v677 = vld [vmem:[#allocation11 + $0x8] sm:$0x3]
        %v678 = vld [vmem:[#allocation13] sm:$0x1]
        %v680 = vlaneseq
        %v681 = vshrl.u32 %v680, 7
        %v682 = vsub.s32 0, %v681
        %v683 = vrot.slane %v678, %v682
        %v693 = vunpack.c.l.b16 %v667
        %v694 = vunpack.c.l.b16 %v668
        %v695 = vunpack.c.l.b16 %v669
        %v696 = vunpack.c.l.b16 %v670
        %v697 = vunpack.c.l.b16 %v671
        %v698 = vunpack.c.l.b16 %v672
        %v699 = vunpack.c.l.b16 %v673
        %v700 = vunpack.c.l.b16 %v674
        %v701 = vpack.c.b16 %v694, %v693
        %v702 = vpack.c.b16 %v696, %v695
        %v703 = vpack.c.b16 %v698, %v697
        %v704 = vpack.c.b16 %v700, %v699
        %v708 = vunpack.c.l.b16 %v675
        %v709 = vunpack.c.l.b16 %v676
        %v710 = vunpack.c.l.b16 %v677
        %v711 = vpack.c.b16 %v709, %v708
        %v712 = vpack.c.b16 %v710, %v710
        %vm714 = vcmask 162816
        %v716 = vsel %vm714, %v701, 0
        %v719 = vsel %vm714, %v702, 0
        %v722 = vsel %vm714, %v703, 0
        %v725 = vsel %vm714, %v704, 0
        %vm727 = vcmask 1041408
        %v729 = vsel %vm727, %v712, 0
        %731 = vmatprep.subr.bf16.mxu0 0
        %732 = vmatpush1.bf16.msra.mxu0 0
        %733 = vmatprep.subr.bf16.mxu0 0
        %734 = vmatpush1.bf16.msra.mxu0 0
        %735 = vmatprep.subr.bf16.mxu0 0
        %736 = vmatpush1.bf16.msra.mxu0 0
        %737 = vmatprep.subr.bf16.mxu0 0
        %738 = vmatpush1.bf16.msra.mxu0 0
        %739 = vmatprep.subr.bf16.mxu0 0
        %740 = vmatpush1.bf16.msra.mxu0 0
        %741 = vmatprep.subr.bf16.mxu0 0
        %742 = vmatpush1.bf16.msra.mxu0 0
        %743 = vmatprep.subr.bf16.mxu0 0
        %744 = vmatpush1.bf16.msra.mxu0 %v729
        %745 = vmatprep.subr.bf16.mxu0 0
        %746 = vmatpush1.bf16.msra.mxu0 %v711
        %747 = vmatprep.subr.bf16.mxu0 0
        %748 = vmatpush2.bf16.msra.mxu0 0
        %749 = vmatprep.subr.bf16.mxu0 0
        %750 = vmatpush2.bf16.msra.mxu0 0
        %751 = vmatprep.subr.bf16.mxu0 0
        %752 = vmatpush2.bf16.msra.mxu0 0
        %753 = vmatprep.subr.bf16.mxu0 0
        %754 = vmatpush2.bf16.msra.mxu0 0
        %755 = vmatprep.subr.bf16.mxu0 0
        %756 = vmatpush2.bf16.msra.mxu0 0
        %757 = vmatprep.subr.bf16.mxu0 0
        %758 = vmatpush2.bf16.msra.mxu0 0
        %759 = vmatprep.subr.bf16.mxu0 0
        %760 = vmatpush2.bf16.msra.mxu0 0
        %761 = vmatprep.subr.bf16.mxu0 0
        %762 = vmatpush2.bf16.msra.mxu0 0
        %763 = vmatprep.mubr.bf16.mxu0 0
        %764 = vmatmul.mubr.bf16.gmra.mxu0 %v716
        %v765 = vpop.f32.mrf.mxu0
        %v766 = vadd.f32 %v683, %v765
        %v767 = vpop.f32.mrf.mxu0
        %v768 = vpop.f32.mrf.mxu0
        %v769 = vadd.f32 %v683, %v768
        %v770 = vpop.f32.mrf.mxu0
        %771 = vmatprep.mubr.bf16.mxu0 0
        %772 = vmatmul.mubr.bf16.gmra.mxu0 %v719
        %v773 = vpop.f32.mrf.mxu0
        %v774 = vadd.f32 %v683, %v773
        %v775 = vpop.f32.mrf.mxu0
        %v776 = vpop.f32.mrf.mxu0
        %v777 = vadd.f32 %v683, %v776
        %v778 = vpop.f32.mrf.mxu0
        %779 = vmatprep.mubr.bf16.mxu0 0
        %780 = vmatmul.mubr.bf16.gmra.mxu0 %v722
        %v781 = vpop.f32.mrf.mxu0
        %v782 = vadd.f32 %v683, %v781
        %v783 = vpop.f32.mrf.mxu0
        %v784 = vpop.f32.mrf.mxu0
        %v785 = vadd.f32 %v683, %v784
        %v786 = vpop.f32.mrf.mxu0
        %787 = vmatprep.mubr.bf16.mxu0 0
        %788 = vmatmul.mubr.bf16.gmra.mxu0 %v725
        %v789 = vpop.f32.mrf.mxu0
        %v790 = vadd.f32 %v683, %v789
        %v791 = vpop.f32.mrf.mxu0
        %v792 = vpop.f32.mrf.mxu0
        %v793 = vadd.f32 %v683, %v792
        %v794 = vpop.f32.mrf.mxu0
        %795 = vdwg.mxu0
        %v796 = vmax.f32 %v766, 0.0
        %v797 = vmax.f32 %v769, 0.0
        %v798 = vmax.f32 %v774, 0.0
        %v799 = vmax.f32 %v777, 0.0
        %v800 = vmax.f32 %v782, 0.0
        %v801 = vmax.f32 %v785, 0.0
        %v802 = vmax.f32 %v790, 0.0
        %v803 = vmax.f32 %v793, 0.0
        %vm804 = vcmp.ne.f32.partialorder %v766, %v766
        %vm805 = vcmp.ne.f32.partialorder %v769, %v769
        %vm806 = vcmp.ne.f32.partialorder %v774, %v774
        %vm807 = vcmp.ne.f32.partialorder %v777, %v777
        %vm808 = vcmp.ne.f32.partialorder %v782, %v782
        %vm809 = vcmp.ne.f32.partialorder %v785, %v785
        %vm810 = vcmp.ne.f32.partialorder %v790, %v790
        %vm811 = vcmp.ne.f32.partialorder %v793, %v793
        %v812 = vadd.f32 %v766, 0.0
        %v813 = vadd.f32 %v769, 0.0
        %v814 = vadd.f32 %v774, 0.0
        %v815 = vadd.f32 %v777, 0.0
        %v816 = vadd.f32 %v782, 0.0
        %v817 = vadd.f32 %v785, 0.0
        %v818 = vadd.f32 %v790, 0.0
        %v819 = vadd.f32 %v793, 0.0
        %v820 = vand.u32 2147483647, %v766
        %v821 = vand.u32 2147483647, %v769
        %v822 = vand.u32 2147483647, %v774
        %v823 = vand.u32 2147483647, %v777
        %v824 = vand.u32 2147483647, %v782
        %v825 = vand.u32 2147483647, %v785
        %v826 = vand.u32 2147483647, %v790
        %v827 = vand.u32 2147483647, %v793
        %v828 = vsub.f32 0.0, %v820
        %v829 = vsub.f32 0.0, %v821
        %v830 = vsub.f32 0.0, %v822
        %v831 = vsub.f32 0.0, %v823
        %v832 = vsub.f32 0.0, %v824
        %v833 = vsub.f32 0.0, %v825
        %v834 = vsub.f32 0.0, %v826
        %v835 = vsub.f32 0.0, %v827
        %v836 = vmul.f32 %v828, 1.442695
        %v837 = vpow.pop %v836
        %v838 = vmul.f32 %v829, 1.442695
        %v839 = vpow.pop %v838
        %v840 = vmul.f32 %v830, 1.442695
        %v841 = vpow.pop %v840
        %v842 = vmul.f32 %v831, 1.442695
        %v843 = vpow.pop %v842
        %v844 = vmul.f32 %v832, 1.442695
        %v845 = vpow.pop %v844
        %v846 = vmul.f32 %v833, 1.442695
        %v847 = vpow.pop %v846
        %v848 = vmul.f32 %v834, 1.442695
        %v849 = vpow.pop %v848
        %v850 = vmul.f32 %v835, 1.442695
        %v851 = vpow.pop %v850
        %v852 = vadd.f32 %v837, 1.0
        %v853 = vlog2.pop %v852
        %v854 = vmul.f32 %v853, 0.6931472
        %v855 = vmul.f32 -0.5, %v837
        %v856 = vadd.f32 %v855, 1.0
        %v857 = vmul.f32 %v856, %v837
        %v858 = vand.u32 2147483647, %v837
        %vm859 = vcmp.lt.f32.partialorder %v858, 0.0004427343
        %v860 = vsel %vm859, %v857, %v854
        %v861 = vadd.f32 %v839, 1.0
        %v862 = vlog2.pop %v861
        %v863 = vmul.f32 %v862, 0.6931472
        %v864 = vmul.f32 -0.5, %v839
        %v865 = vadd.f32 %v864, 1.0
        %v866 = vmul.f32 %v865, %v839
        %v867 = vand.u32 2147483647, %v839
        %vm868 = vcmp.lt.f32.partialorder %v867, 0.0004427343
        %v869 = vsel %vm868, %v866, %v863
        %v870 = vadd.f32 %v841, 1.0
        %v871 = vlog2.pop %v870
        %v872 = vmul.f32 %v871, 0.6931472
        %v873 = vmul.f32 -0.5, %v841
        %v874 = vadd.f32 %v873, 1.0
        %v875 = vmul.f32 %v874, %v841
        %v876 = vand.u32 2147483647, %v841
        %vm877 = vcmp.lt.f32.partialorder %v876, 0.0004427343
        %v878 = vsel %vm877, %v875, %v872
        %v879 = vadd.f32 %v843, 1.0
        %v880 = vlog2.pop %v879
        %v881 = vmul.f32 %v880, 0.6931472
        %v882 = vmul.f32 -0.5, %v843
        %v883 = vadd.f32 %v882, 1.0
        %v884 = vmul.f32 %v883, %v843
        %v885 = vand.u32 2147483647, %v843
        %vm886 = vcmp.lt.f32.partialorder %v885, 0.0004427343
        %v887 = vsel %vm886, %v884, %v881
        %v888 = vadd.f32 %v845, 1.0
        %v889 = vlog2.pop %v888
        %v890 = vmul.f32 %v889, 0.6931472
        %v891 = vmul.f32 -0.5, %v845
        %v892 = vadd.f32 %v891, 1.0
        %v893 = vmul.f32 %v892, %v845
        %v894 = vand.u32 2147483647, %v845
        %vm895 = vcmp.lt.f32.partialorder %v894, 0.0004427343
        %v896 = vsel %vm895, %v893, %v890
        %v897 = vadd.f32 %v847, 1.0
        %v898 = vlog2.pop %v897
        %v899 = vmul.f32 %v898, 0.6931472
        %v900 = vmul.f32 -0.5, %v847
        %v901 = vadd.f32 %v900, 1.0
        %v902 = vmul.f32 %v901, %v847
        %v903 = vand.u32 2147483647, %v847
        %vm904 = vcmp.lt.f32.partialorder %v903, 0.0004427343
        %v905 = vsel %vm904, %v902, %v899
        %v906 = vadd.f32 %v849, 1.0
        %v907 = vlog2.pop %v906
        %v908 = vmul.f32 %v907, 0.6931472
        %v909 = vmul.f32 -0.5, %v849
        %v910 = vadd.f32 %v909, 1.0
        %v911 = vmul.f32 %v910, %v849
        %v912 = vand.u32 2147483647, %v849
        %vm913 = vcmp.lt.f32.partialorder %v912, 0.0004427343
        %v914 = vsel %vm913, %v911, %v908
        %v915 = vadd.f32 %v851, 1.0
        %v916 = vlog2.pop %v915
        %v917 = vmul.f32 %v916, 0.6931472
        %v918 = vmul.f32 -0.5, %v851
        %v919 = vadd.f32 %v918, 1.0
        %v920 = vmul.f32 %v919, %v851
        %v921 = vand.u32 2147483647, %v851
        %vm922 = vcmp.lt.f32.partialorder %v921, 0.0004427343
        %v923 = vsel %vm922, %v920, %v917
        %v924 = vadd.f32 %v796, %v860
        %v925 = vadd.f32 %v797, %v869
        %v926 = vadd.f32 %v798, %v878
        %v927 = vadd.f32 %v799, %v887
        %v928 = vadd.f32 %v800, %v896
        %v929 = vadd.f32 %v801, %v905
        %v930 = vadd.f32 %v802, %v914
        %v931 = vadd.f32 %v803, %v923
        %v932 = vsel %vm804, %v812, %v924
        %v933 = vsel %vm805, %v813, %v925
        %v934 = vsel %vm806, %v814, %v926
        %v935 = vsel %vm807, %v815, %v927
        %v936 = vsel %vm808, %v816, %v928
        %v937 = vsel %vm809, %v817, %v929
        %v938 = vsel %vm810, %v818, %v930
        %v939 = vsel %vm811, %v819, %v931
        %v940 = vsub.f32 %v932, 0.6931472
        %v941 = vsub.f32 %v933, 0.6931472
        %v942 = vsub.f32 %v934, 0.6931472
        %v943 = vsub.f32 %v935, 0.6931472
        %v944 = vsub.f32 %v936, 0.6931472
        %v945 = vsub.f32 %v937, 0.6931472
        %v946 = vsub.f32 %v938, 0.6931472
        %v947 = vsub.f32 %v939, 0.6931472
        %v948 = vpack.c.bf16 %v941, %v940
        %v949 = vpack.c.bf16 %v943, %v942
        %v950 = vpack.c.bf16 %v945, %v944
        %v951 = vpack.c.bf16 %v947, %v946
        %v952 = vld [vmem:[#allocation14] sm:$0xf]
        %v953 = vld [vmem:[#allocation14 + $0x4] sm:$0xf]
        %v954 = vld [vmem:[#allocation14 + $0x8] sm:$0xf]
        %v955 = vld [vmem:[#allocation14 + $0xc] sm:$0xf]
        %v956 = vld [vmem:[#allocation16] sm:$0x1]
        %v958 = vlaneseq
        %v959 = vshrl.u32 %v958, 7
        %v960 = vsub.s32 0, %v959
        %v961 = vrot.slane %v956, %v960
        %v967 = vunpack.c.l.b16 %v952
        %v968 = vunpack.c.l.b16 %v953
        %v969 = vunpack.c.l.b16 %v954
        %v970 = vunpack.c.l.b16 %v955
        %v971 = vpack.c.b16 %v968, %v967
        %v972 = vpack.c.b16 %v970, %v969
        %vm975 = vcmask 261120
        %v977 = vsel %vm975, %v948, 0
        %v980 = vsel %vm975, %v949, 0
        %v983 = vsel %vm975, %v950, 0
        %v986 = vsel %vm975, %v951, 0
        %988 = vmatprep.subr.bf16.mxu0 0
        %989 = vmatpush1.bf16.msra.mxu0 0
        %990 = vmatprep.subr.bf16.mxu0 0
        %991 = vmatpush1.bf16.msra.mxu0 0
        %992 = vmatprep.subr.bf16.mxu0 0
        %993 = vmatpush1.bf16.msra.mxu0 0
        %994 = vmatprep.subr.bf16.mxu0 0
        %995 = vmatpush1.bf16.msra.mxu0 0
        %996 = vmatprep.subr.bf16.mxu0 0
        %997 = vmatpush1.bf16.msra.mxu0 0
        %998 = vmatprep.subr.bf16.mxu0 0
        %999 = vmatpush1.bf16.msra.mxu0 0
        %1000 = vmatprep.subr.bf16.mxu0 0
        %1001 = vmatpush1.bf16.msra.mxu0 %v972
        %1002 = vmatprep.subr.bf16.mxu0 0
        %1003 = vmatpush1.bf16.msra.mxu0 %v971
        %1004 = vmatprep.subr.bf16.mxu0 0
        %1005 = vmatpush2.bf16.msra.mxu0 0
        %1006 = vmatprep.subr.bf16.mxu0 0
        %1007 = vmatpush2.bf16.msra.mxu0 0
        %1008 = vmatprep.subr.bf16.mxu0 0
        %1009 = vmatpush2.bf16.msra.mxu0 0
        %1010 = vmatprep.subr.bf16.mxu0 0
        %1011 = vmatpush2.bf16.msra.mxu0 0
        %1012 = vmatprep.subr.bf16.mxu0 0
        %1013 = vmatpush2.bf16.msra.mxu0 0
        %1014 = vmatprep.subr.bf16.mxu0 0
        %1015 = vmatpush2.bf16.msra.mxu0 0
        %1016 = vmatprep.subr.bf16.mxu0 0
        %1017 = vmatpush2.bf16.msra.mxu0 0
        %1018 = vmatprep.subr.bf16.mxu0 0
        %1019 = vmatpush2.bf16.msra.mxu0 0
        %1020 = vmatprep.mubr.bf16.mxu0 0
        %1021 = vmatmul.mubr.bf16.gmra.mxu0 %v977
        %v1022 = vpop.f32.mrf.mxu0
        %v1023 = vadd.f32 %v961, %v1022
        %v1024 = vpop.f32.mrf.mxu0
        %v1025 = vpop.f32.mrf.mxu0
        %v1026 = vadd.f32 %v961, %v1025
        %v1027 = vpop.f32.mrf.mxu0
        %1028 = vmatprep.mubr.bf16.mxu0 0
        %1029 = vmatmul.mubr.bf16.gmra.mxu0 %v980
        %v1030 = vpop.f32.mrf.mxu0
        %v1031 = vadd.f32 %v961, %v1030
        %v1032 = vpop.f32.mrf.mxu0
        %v1033 = vpop.f32.mrf.mxu0
        %v1034 = vadd.f32 %v961, %v1033
        %v1035 = vpop.f32.mrf.mxu0
        %1036 = vmatprep.mubr.bf16.mxu0 0
        %1037 = vmatmul.mubr.bf16.gmra.mxu0 %v983
        %v1038 = vpop.f32.mrf.mxu0
        %v1039 = vadd.f32 %v961, %v1038
        %v1040 = vpop.f32.mrf.mxu0
        %v1041 = vpop.f32.mrf.mxu0
        %v1042 = vadd.f32 %v961, %v1041
        %v1043 = vpop.f32.mrf.mxu0
        %1044 = vmatprep.mubr.bf16.mxu0 0
        %1045 = vmatmul.mubr.bf16.gmra.mxu0 %v986
        %v1046 = vpop.f32.mrf.mxu0
        %v1047 = vadd.f32 %v961, %v1046
        %v1048 = vpop.f32.mrf.mxu0
        %v1049 = vpop.f32.mrf.mxu0
        %v1050 = vadd.f32 %v961, %v1049
        %v1051 = vpop.f32.mrf.mxu0
        %1052 = vdwg.mxu0
        %v1053 = vld [vmem:[%s572] sm:$0xff]
        %v1055 = vcombine.high %v1053, %v1053
        %v1057 = vunpack.c.l.s4 1966171168
        %v1058 = vunpack.c.0.s8 %v1057
        %v1059 = vlaneseq
        %v1060 = vshrl.u32 %v1059, 7
        %v1061 = vsub.s32 %v1058, %v1060
        %v1062 = vrot.slane %v1053, %v1061
        %v1064 = vunpack.c.l.s4 1966171168
        %v1065 = vunpack.c.0.s8 %v1064
        %v1066 = vlaneseq
        %v1067 = vshrl.u32 %v1066, 7
        %v1068 = vsub.s32 %v1065, %v1067
        %v1069 = vrot.slane %v1055, %v1068
        %v1070 = vcombine.high %v1062, %v1062
        %v1071 = vcombine.high %v1069, %v1069
        %v1073 = vunpack.c.l.s4 1966171168
        %v1074 = vunpack.c.0.s8 %v1073
        %v1075 = vlaneseq
        %v1076 = vshrl.u32 %v1075, 7
        %v1077 = vsub.s32 %v1074, %v1076
        %v1078 = vrot.slane %v1062, %v1077
        %v1080 = vunpack.c.l.s4 1966171168
        %v1081 = vunpack.c.0.s8 %v1080
        %v1082 = vlaneseq
        %v1083 = vshrl.u32 %v1082, 7
        %v1084 = vsub.s32 %v1081, %v1083
        %v1085 = vrot.slane %v1069, %v1084
        %v1087 = vunpack.c.l.s4 1966171168
        %v1088 = vunpack.c.0.s8 %v1087
        %v1089 = vlaneseq
        %v1090 = vshrl.u32 %v1089, 7
        %v1091 = vsub.s32 %v1088, %v1090
        %v1092 = vrot.slane %v1070, %v1091
        %v1094 = vunpack.c.l.s4 1966171168
        %v1095 = vunpack.c.0.s8 %v1094
        %v1096 = vlaneseq
        %v1097 = vshrl.u32 %v1096, 7
        %v1098 = vsub.s32 %v1095, %v1097
        %v1099 = vrot.slane %v1071, %v1098
        %v1100 = vcombine.high %v1078, %v1078
        %v1101 = vcombine.high %v1085, %v1085
        %v1102 = vcombine.high %v1092, %v1092
        %v1103 = vcombine.high %v1099, %v1099
        %v1104 = vld [vmem:[%s563] sm:$0xff]
        %v1105 = vlaneseq
        %v1106 = vshrl.u32 %v1105, 7
        %v1107 = vsub.s32 0, %v1106
        %v1108 = vrot.slane %v1078, %v1107
        %v1109 = vlaneseq
        %v1110 = vshrl.u32 %v1109, 7
        %v1111 = vsub.s32 0, %v1110
        %v1112 = vrot.slane %v1092, %v1111
        %v1113 = vlaneseq
        %v1114 = vshrl.u32 %v1113, 7
        %v1115 = vsub.s32 0, %v1114
        %v1116 = vrot.slane %v1100, %v1115
        %v1117 = vlaneseq
        %v1118 = vshrl.u32 %v1117, 7
        %v1119 = vsub.s32 0, %v1118
        %v1120 = vrot.slane %v1102, %v1119
        %v1121 = vlaneseq
        %v1122 = vshrl.u32 %v1121, 7
        %v1123 = vsub.s32 0, %v1122
        %v1124 = vrot.slane %v1085, %v1123
        %v1125 = vlaneseq
        %v1126 = vshrl.u32 %v1125, 7
        %v1127 = vsub.s32 0, %v1126
        %v1128 = vrot.slane %v1099, %v1127
        %v1129 = vlaneseq
        %v1130 = vshrl.u32 %v1129, 7
        %v1131 = vsub.s32 0, %v1130
        %v1132 = vrot.slane %v1101, %v1131
        %v1133 = vlaneseq
        %v1134 = vshrl.u32 %v1133, 7
        %v1135 = vsub.s32 0, %v1134
        %v1136 = vrot.slane %v1103, %v1135
        %v1145 = vadd.f32 %v1108, %v1104
        %v1146 = vadd.f32 %v1112, %v1104
        %v1147 = vadd.f32 %v1116, %v1104
        %v1148 = vadd.f32 %v1120, %v1104
        %v1149 = vadd.f32 %v1124, %v1104
        %v1150 = vadd.f32 %v1128, %v1104
        %v1151 = vadd.f32 %v1132, %v1104
        %v1152 = vadd.f32 %v1136, %v1104
        %v1153 = vmax.f32 %v1145, 0.0
        %v1154 = vmax.f32 %v1146, 0.0
        %v1155 = vmax.f32 %v1147, 0.0
        %v1156 = vmax.f32 %v1148, 0.0
        %v1157 = vmax.f32 %v1149, 0.0
        %v1158 = vmax.f32 %v1150, 0.0
        %v1159 = vmax.f32 %v1151, 0.0
        %v1160 = vmax.f32 %v1152, 0.0
        %vm1161 = vcmp.ne.f32.partialorder %v1145, %v1145
        %vm1162 = vcmp.ne.f32.partialorder %v1146, %v1146
        %vm1163 = vcmp.ne.f32.partialorder %v1147, %v1147
        %vm1164 = vcmp.ne.f32.partialorder %v1148, %v1148
        %vm1165 = vcmp.ne.f32.partialorder %v1149, %v1149
        %vm1166 = vcmp.ne.f32.partialorder %v1150, %v1150
        %vm1167 = vcmp.ne.f32.partialorder %v1151, %v1151
        %vm1168 = vcmp.ne.f32.partialorder %v1152, %v1152
        %v1169 = vadd.f32 %v1145, 0.0
        %v1170 = vadd.f32 %v1146, 0.0
        %v1171 = vadd.f32 %v1147, 0.0
        %v1172 = vadd.f32 %v1148, 0.0
        %v1173 = vadd.f32 %v1149, 0.0
        %v1174 = vadd.f32 %v1150, 0.0
        %v1175 = vadd.f32 %v1151, 0.0
        %v1176 = vadd.f32 %v1152, 0.0
        %v1177 = vand.u32 2147483647, %v1145
        %v1178 = vand.u32 2147483647, %v1146
        %v1179 = vand.u32 2147483647, %v1147
        %v1180 = vand.u32 2147483647, %v1148
        %v1181 = vand.u32 2147483647, %v1149
        %v1182 = vand.u32 2147483647, %v1150
        %v1183 = vand.u32 2147483647, %v1151
        %v1184 = vand.u32 2147483647, %v1152
        %v1185 = vsub.f32 0.0, %v1177
        %v1186 = vsub.f32 0.0, %v1178
        %v1187 = vsub.f32 0.0, %v1179
        %v1188 = vsub.f32 0.0, %v1180
        %v1189 = vsub.f32 0.0, %v1181
        %v1190 = vsub.f32 0.0, %v1182
        %v1191 = vsub.f32 0.0, %v1183
        %v1192 = vsub.f32 0.0, %v1184
        %v1193 = vmul.f32 %v1185, 1.442695
        %v1194 = vpow.pop %v1193
        %v1195 = vmul.f32 %v1186, 1.442695
        %v1196 = vpow.pop %v1195
        %v1197 = vmul.f32 %v1187, 1.442695
        %v1198 = vpow.pop %v1197
        %v1199 = vmul.f32 %v1188, 1.442695
        %v1200 = vpow.pop %v1199
        %v1201 = vmul.f32 %v1189, 1.442695
        %v1202 = vpow.pop %v1201
        %v1203 = vmul.f32 %v1190, 1.442695
        %v1204 = vpow.pop %v1203
        %v1205 = vmul.f32 %v1191, 1.442695
        %v1206 = vpow.pop %v1205
        %v1207 = vmul.f32 %v1192, 1.442695
        %v1208 = vpow.pop %v1207
        %v1209 = vadd.f32 %v1194, 1.0
        %v1210 = vlog2.pop %v1209
        %v1211 = vmul.f32 %v1210, 0.6931472
        %v1212 = vmul.f32 -0.5, %v1194
        %v1213 = vadd.f32 %v1212, 1.0
        %v1214 = vmul.f32 %v1213, %v1194
        %v1215 = vand.u32 2147483647, %v1194
        %vm1216 = vcmp.lt.f32.partialorder %v1215, 0.0004427343
        %v1217 = vsel %vm1216, %v1214, %v1211
        %v1218 = vadd.f32 %v1196, 1.0
        %v1219 = vlog2.pop %v1218
        %v1220 = vmul.f32 %v1219, 0.6931472
        %v1221 = vmul.f32 -0.5, %v1196
        %v1222 = vadd.f32 %v1221, 1.0
        %v1223 = vmul.f32 %v1222, %v1196
        %v1224 = vand.u32 2147483647, %v1196
        %vm1225 = vcmp.lt.f32.partialorder %v1224, 0.0004427343
        %v1226 = vsel %vm1225, %v1223, %v1220
        %v1227 = vadd.f32 %v1198, 1.0
        %v1228 = vlog2.pop %v1227
        %v1229 = vmul.f32 %v1228, 0.6931472
        %v1230 = vmul.f32 -0.5, %v1198
        %v1231 = vadd.f32 %v1230, 1.0
        %v1232 = vmul.f32 %v1231, %v1198
        %v1233 = vand.u32 2147483647, %v1198
        %vm1234 = vcmp.lt.f32.partialorder %v1233, 0.0004427343
        %v1235 = vsel %vm1234, %v1232, %v1229
        %v1236 = vadd.f32 %v1200, 1.0
        %v1237 = vlog2.pop %v1236
        %v1238 = vmul.f32 %v1237, 0.6931472
        %v1239 = vmul.f32 -0.5, %v1200
        %v1240 = vadd.f32 %v1239, 1.0
        %v1241 = vmul.f32 %v1240, %v1200
        %v1242 = vand.u32 2147483647, %v1200
        %vm1243 = vcmp.lt.f32.partialorder %v1242, 0.0004427343
        %v1244 = vsel %vm1243, %v1241, %v1238
        %v1245 = vadd.f32 %v1202, 1.0
        %v1246 = vlog2.pop %v1245
        %v1247 = vmul.f32 %v1246, 0.6931472
        %v1248 = vmul.f32 -0.5, %v1202
        %v1249 = vadd.f32 %v1248, 1.0
        %v1250 = vmul.f32 %v1249, %v1202
        %v1251 = vand.u32 2147483647, %v1202
        %vm1252 = vcmp.lt.f32.partialorder %v1251, 0.0004427343
        %v1253 = vsel %vm1252, %v1250, %v1247
        %v1254 = vadd.f32 %v1204, 1.0
        %v1255 = vlog2.pop %v1254
        %v1256 = vmul.f32 %v1255, 0.6931472
        %v1257 = vmul.f32 -0.5, %v1204
        %v1258 = vadd.f32 %v1257, 1.0
        %v1259 = vmul.f32 %v1258, %v1204
        %v1260 = vand.u32 2147483647, %v1204
        %vm1261 = vcmp.lt.f32.partialorder %v1260, 0.0004427343
        %v1262 = vsel %vm1261, %v1259, %v1256
        %v1263 = vadd.f32 %v1206, 1.0
        %v1264 = vlog2.pop %v1263
        %v1265 = vmul.f32 %v1264, 0.6931472
        %v1266 = vmul.f32 -0.5, %v1206
        %v1267 = vadd.f32 %v1266, 1.0
        %v1268 = vmul.f32 %v1267, %v1206
        %v1269 = vand.u32 2147483647, %v1206
        %vm1270 = vcmp.lt.f32.partialorder %v1269, 0.0004427343
        %v1271 = vsel %vm1270, %v1268, %v1265
        %v1272 = vadd.f32 %v1208, 1.0
        %v1273 = vlog2.pop %v1272
        %v1274 = vmul.f32 %v1273, 0.6931472
        %v1275 = vmul.f32 -0.5, %v1208
        %v1276 = vadd.f32 %v1275, 1.0
        %v1277 = vmul.f32 %v1276, %v1208
        %v1278 = vand.u32 2147483647, %v1208
        %vm1279 = vcmp.lt.f32.partialorder %v1278, 0.0004427343
        %v1280 = vsel %vm1279, %v1277, %v1274
        %v1281 = vadd.f32 %v1153, %v1217
        %v1282 = vadd.f32 %v1154, %v1226
        %v1283 = vadd.f32 %v1155, %v1235
        %v1284 = vadd.f32 %v1156, %v1244
        %v1285 = vadd.f32 %v1157, %v1253
        %v1286 = vadd.f32 %v1158, %v1262
        %v1287 = vadd.f32 %v1159, %v1271
        %v1288 = vadd.f32 %v1160, %v1280
        %v1289 = vsel %vm1161, %v1169, %v1281
        %v1290 = vsel %vm1162, %v1170, %v1282
        %v1291 = vsel %vm1163, %v1171, %v1283
        %v1292 = vsel %vm1164, %v1172, %v1284
        %v1293 = vsel %vm1165, %v1173, %v1285
        %v1294 = vsel %vm1166, %v1174, %v1286
        %v1295 = vsel %vm1167, %v1175, %v1287
        %v1296 = vsel %vm1168, %v1176, %v1288
        %v1297 = vsub.f32 %v1289, 0.6931472
        %v1298 = vsub.f32 %v1290, 0.6931472
        %v1299 = vsub.f32 %v1291, 0.6931472
        %v1300 = vsub.f32 %v1292, 0.6931472
        %v1301 = vsub.f32 %v1293, 0.6931472
        %v1302 = vsub.f32 %v1294, 0.6931472
        %v1303 = vsub.f32 %v1295, 0.6931472
        %v1304 = vsub.f32 %v1296, 0.6931472
        %v1305 = vpack.c.bf16 %v1297, %v1297
        %v1306 = vpack.c.bf16 %v1298, %v1298
        %v1307 = vpack.c.bf16 %v1299, %v1299
        %v1308 = vpack.c.bf16 %v1300, %v1300
        %v1309 = vpack.c.bf16 %v1301, %v1301
        %v1310 = vpack.c.bf16 %v1302, %v1302
        %v1311 = vpack.c.bf16 %v1303, %v1303
        %v1312 = vpack.c.bf16 %v1304, %v1304
        %v1313 = vld [vmem:[%s9] sm:$0xf]
        %v1314 = vld [vmem:[%s9 + $0x4] sm:$0xf]
        %v1315 = vld [vmem:[%s9 + $0x8] sm:$0xf]
        %v1316 = vld [vmem:[%s9 + $0xc] sm:$0xf]
        %v1317 = vld [vmem:[%s10] sm:$0x1]
        %v1319 = vlaneseq
        %v1320 = vshrl.u32 %v1319, 7
        %v1321 = vsub.s32 0, %v1320
        %v1322 = vrot.slane %v1317, %v1321
        %v1332 = vunpack.c.l.b16 %v1305
        %v1333 = vunpack.c.l.b16 %v1306
        %v1334 = vunpack.c.l.b16 %v1307
        %v1335 = vunpack.c.l.b16 %v1308
        %v1336 = vunpack.c.l.b16 %v1309
        %v1337 = vunpack.c.l.b16 %v1310
        %v1338 = vunpack.c.l.b16 %v1311
        %v1339 = vunpack.c.l.b16 %v1312
        %v1340 = vpack.c.b16 %v1333, %v1332
        %v1341 = vpack.c.b16 %v1335, %v1334
        %v1342 = vpack.c.b16 %v1337, %v1336
        %v1343 = vpack.c.b16 %v1339, %v1338
        %v1348 = vunpack.c.l.b16 %v1313
        %v1349 = vunpack.c.l.b16 %v1314
        %v1350 = vunpack.c.l.b16 %v1315
        %v1351 = vunpack.c.l.b16 %v1316
        %v1352 = vpack.c.b16 %v1349, %v1348
        %v1353 = vpack.c.b16 %v1351, %v1350
        %v1357 = vsel %vm975, %v1340, 0
        %v1360 = vsel %vm975, %v1341, 0
        %v1363 = vsel %vm975, %v1342, 0
        %v1366 = vsel %vm975, %v1343, 0
        %1368 = vmatprep.subr.bf16.mxu0 0
        %1369 = vmatpush1.bf16.msra.mxu0 0
        %1370 = vmatprep.subr.bf16.mxu0 0
        %1371 = vmatpush1.bf16.msra.mxu0 0
        %1372 = vmatprep.subr.bf16.mxu0 0
        %1373 = vmatpush1.bf16.msra.mxu0 0
        %1374 = vmatprep.subr.bf16.mxu0 0
        %1375 = vmatpush1.bf16.msra.mxu0 0
        %1376 = vmatprep.subr.bf16.mxu0 0
        %1377 = vmatpush1.bf16.msra.mxu0 0
        %1378 = vmatprep.subr.bf16.mxu0 0
        %1379 = vmatpush1.bf16.msra.mxu0 0
        %1380 = vmatprep.subr.bf16.mxu0 0
        %1381 = vmatpush1.bf16.msra.mxu0 %v1353
        %1382 = vmatprep.subr.bf16.mxu0 0
        %1383 = vmatpush1.bf16.msra.mxu0 %v1352
        %1384 = vmatprep.subr.bf16.mxu0 0
        %1385 = vmatpush2.bf16.msra.mxu0 0
        %1386 = vmatprep.subr.bf16.mxu0 0
        %1387 = vmatpush2.bf16.msra.mxu0 0
        %1388 = vmatprep.subr.bf16.mxu0 0
        %1389 = vmatpush2.bf16.msra.mxu0 0
        %1390 = vmatprep.subr.bf16.mxu0 0
        %1391 = vmatpush2.bf16.msra.mxu0 0
        %1392 = vmatprep.subr.bf16.mxu0 0
        %1393 = vmatpush2.bf16.msra.mxu0 0
        %1394 = vmatprep.subr.bf16.mxu0 0
        %1395 = vmatpush2.bf16.msra.mxu0 0
        %1396 = vmatprep.subr.bf16.mxu0 0
        %1397 = vmatpush2.bf16.msra.mxu0 0
        %1398 = vmatprep.subr.bf16.mxu0 0
        %1399 = vmatpush2.bf16.msra.mxu0 0
        %1400 = vmatprep.mubr.bf16.mxu0 0
        %1401 = vmatmul.mubr.bf16.gmra.mxu0 %v1357
        %v1402 = vpop.f32.mrf.mxu0
        %v1403 = vadd.f32 %v1322, %v1402
        %v1404 = vpop.f32.mrf.mxu0
        %v1405 = vpop.f32.mrf.mxu0
        %v1406 = vadd.f32 %v1322, %v1405
        %v1407 = vpop.f32.mrf.mxu0
        %1408 = vmatprep.mubr.bf16.mxu0 0
        %1409 = vmatmul.mubr.bf16.gmra.mxu0 %v1360
        %v1410 = vpop.f32.mrf.mxu0
        %v1411 = vadd.f32 %v1322, %v1410
        %v1412 = vpop.f32.mrf.mxu0
        %v1413 = vpop.f32.mrf.mxu0
        %v1414 = vadd.f32 %v1322, %v1413
        %v1415 = vpop.f32.mrf.mxu0
        %1416 = vmatprep.mubr.bf16.mxu0 0
        %1417 = vmatmul.mubr.bf16.gmra.mxu0 %v1363
        %v1418 = vpop.f32.mrf.mxu0
        %v1419 = vadd.f32 %v1322, %v1418
        %v1420 = vpop.f32.mrf.mxu0
        %v1421 = vpop.f32.mrf.mxu0
        %v1422 = vadd.f32 %v1322, %v1421
        %v1423 = vpop.f32.mrf.mxu0
        %1424 = vmatprep.mubr.bf16.mxu0 0
        %1425 = vmatmul.mubr.bf16.gmra.mxu0 %v1366
        %v1426 = vpop.f32.mrf.mxu0
        %v1427 = vadd.f32 %v1322, %v1426
        %v1428 = vpop.f32.mrf.mxu0
        %v1429 = vpop.f32.mrf.mxu0
        %v1430 = vadd.f32 %v1322, %v1429
        %v1431 = vpop.f32.mrf.mxu0
        %1432 = vdwg.mxu0
        %v1433 = vmul.f32 %v1023, %v1403
        %v1434 = vmul.f32 %v1026, %v1406
        %v1435 = vmul.f32 %v1031, %v1411
        %v1436 = vmul.f32 %v1034, %v1414
        %v1437 = vmul.f32 %v1039, %v1419
        %v1438 = vmul.f32 %v1042, %v1422
        %v1439 = vmul.f32 %v1047, %v1427
        %v1440 = vmul.f32 %v1050, %v1430
        %v1441 = vld [vmem:[%s646] sm:$0xff]
        %v1442 = vlaneseq
        %v1443 = vshrl.u32 %v1442, 7
        %v1444 = vsub.s32 0, %v1443
        %v1445 = vrot.slane %v666, %v1444
        %1447 = vbcast.lane.b32.xlu0 %v1445, 256
        %v1448 = vpop.permute.xlu0 %1447
        %v1449 = vlaneseq
        %v1450 = vshrl.u32 %v1449, 7
        %v1451 = vsub.s32 1, %v1450
        %v1452 = vrot.slane %v666, %v1451
        %1454 = vbcast.lane.b32.xlu0 %v1452, 256
        %v1455 = vpop.permute.xlu0 %1454
        %v1456 = vlaneseq
        %v1457 = vshrl.u32 %v1456, 7
        %v1458 = vsub.s32 2, %v1457
        %v1459 = vrot.slane %v666, %v1458
        %1461 = vbcast.lane.b32.xlu0 %v1459, 256
        %v1462 = vpop.permute.xlu0 %1461
        %v1463 = vlaneseq
        %v1464 = vshrl.u32 %v1463, 7
        %v1465 = vsub.s32 3, %v1464
        %v1466 = vrot.slane %v666, %v1465
        %1468 = vbcast.lane.b32.xlu0 %v1466, 256
        %v1469 = vpop.permute.xlu0 %1468
        %v1470 = vlaneseq
        %v1471 = vshrl.u32 %v1470, 7
        %v1472 = vsub.s32 4, %v1471
        %v1473 = vrot.slane %v666, %v1472
        %1475 = vbcast.lane.b32.xlu0 %v1473, 256
        %v1476 = vpop.permute.xlu0 %1475
        %v1477 = vlaneseq
        %v1478 = vshrl.u32 %v1477, 7
        %v1479 = vsub.s32 5, %v1478
        %v1480 = vrot.slane %v666, %v1479
        %1482 = vbcast.lane.b32.xlu0 %v1480, 256
        %v1483 = vpop.permute.xlu0 %1482
        %v1484 = vlaneseq
        %v1485 = vshrl.u32 %v1484, 7
        %v1486 = vsub.s32 6, %v1485
        %v1487 = vrot.slane %v666, %v1486
        %1489 = vbcast.lane.b32.xlu0 %v1487, 256
        %v1490 = vpop.permute.xlu0 %1489
        %v1491 = vlaneseq
        %v1492 = vshrl.u32 %v1491, 7
        %v1493 = vsub.s32 7, %v1492
        %v1494 = vrot.slane %v666, %v1493
        %1496 = vbcast.lane.b32.xlu0 %v1494, 256
        %v1497 = vpop.permute.xlu0 %1496
        %v1498 = vmul.f32 %v1448, %v1433
        %v1499 = vmul.f32 %v1455, %v1434
        %v1500 = vmul.f32 %v1462, %v1435
        %v1501 = vmul.f32 %v1469, %v1436
        %v1502 = vmul.f32 %v1476, %v1437
        %v1503 = vmul.f32 %v1483, %v1438
        %v1504 = vmul.f32 %v1490, %v1439
        %v1505 = vmul.f32 %v1497, %v1440
        %v1506 = vsel %vm975, %v1498, 0.0
        %v1507 = vrot.slane %v1506, 4
        %v1508 = vadd.f32 %v1506, %v1507
        %v1509 = vrot.slane %v1508, 2
        %v1510 = vadd.f32 %v1508, %v1509
        %v1511 = vrot.slane %v1510, 1
        %v1512 = vadd.f32 %v1510, %v1511
        %v1513 = vsel %vm975, %v1499, 0.0
        %v1514 = vrot.slane %v1513, 4
        %v1515 = vadd.f32 %v1513, %v1514
        %v1516 = vrot.slane %v1515, 2
        %v1517 = vadd.f32 %v1515, %v1516
        %v1518 = vrot.slane %v1517, 1
        %v1519 = vadd.f32 %v1517, %v1518
        %v1520 = vsel %vm975, %v1500, 0.0
        %v1521 = vrot.slane %v1520, 4
        %v1522 = vadd.f32 %v1520, %v1521
        %v1523 = vrot.slane %v1522, 2
        %v1524 = vadd.f32 %v1522, %v1523
        %v1525 = vrot.slane %v1524, 1
        %v1526 = vadd.f32 %v1524, %v1525
        %v1527 = vsel %vm975, %v1501, 0.0
        %v1528 = vrot.slane %v1527, 4
        %v1529 = vadd.f32 %v1527, %v1528
        %v1530 = vrot.slane %v1529, 2
        %v1531 = vadd.f32 %v1529, %v1530
        %v1532 = vrot.slane %v1531, 1
        %v1533 = vadd.f32 %v1531, %v1532
        %v1534 = vsel %vm975, %v1502, 0.0
        %v1535 = vrot.slane %v1534, 4
        %v1536 = vadd.f32 %v1534, %v1535
        %v1537 = vrot.slane %v1536, 2
        %v1538 = vadd.f32 %v1536, %v1537
        %v1539 = vrot.slane %v1538, 1
        %v1540 = vadd.f32 %v1538, %v1539
        %v1541 = vsel %vm975, %v1503, 0.0
        %v1542 = vrot.slane %v1541, 4
        %v1543 = vadd.f32 %v1541, %v1542
        %v1544 = vrot.slane %v1543, 2
        %v1545 = vadd.f32 %v1543, %v1544
        %v1546 = vrot.slane %v1545, 1
        %v1547 = vadd.f32 %v1545, %v1546
        %v1548 = vsel %vm975, %v1504, 0.0
        %v1549 = vrot.slane %v1548, 4
        %v1550 = vadd.f32 %v1548, %v1549
        %v1551 = vrot.slane %v1550, 2
        %v1552 = vadd.f32 %v1550, %v1551
        %v1553 = vrot.slane %v1552, 1
        %v1554 = vadd.f32 %v1552, %v1553
        %v1555 = vsel %vm975, %v1505, 0.0
        %v1556 = vrot.slane %v1555, 4
        %v1557 = vadd.f32 %v1555, %v1556
        %v1558 = vrot.slane %v1557, 2
        %v1559 = vadd.f32 %v1557, %v1558
        %v1560 = vrot.slane %v1559, 1
        %v1561 = vadd.f32 %v1559, %v1560
        %vm1570 = vcmask 1041409
        %v1571 = vsel %vm1570, %v1519, %v1512
        %vm1572 = vcmask 1042434
        %v1573 = vsel %vm1572, %v1526, %v1571
        %vm1574 = vcmask 1043459
        %v1575 = vsel %vm1574, %v1533, %v1573
        %vm1576 = vcmask 1044484
        %v1577 = vsel %vm1576, %v1540, %v1575
        %vm1578 = vcmask 1045509
        %v1579 = vsel %vm1578, %v1547, %v1577
        %vm1580 = vcmask 1046534
        %v1581 = vsel %vm1580, %v1554, %v1579
        %vm1582 = vcmask 1047559
        %v1583 = vsel %vm1582, %v1561, %v1581
        %v1585 = vadd.f32 %v1441, %v1583
        %1586 = vst.msk [vmem:[%s646] sm:$0xff] %vm975, %v1585
        %s1587 = sand.u32 %s337, 1
        %s1588 = scalar_lea.sflag [#allocation4], %s1587
        %s1589 = sand.u32 %s337, 1
        %s1590 = smul.addr %s1589, 8
        %s1591 = scalar_lea.vmem [#allocation17], %s1590
        // Predicated region
        $region105: #{tpu_custom_call.1} parent=63 // pred_check
          %p1592 = pneg %p347
        $region106: #{tpu_custom_call.1} parent=63 // pred_check_branch
          %1594 = sbr.rel (%p1592) target = $region108
        $region107: #{tpu_custom_call.1} parent=63 // pred_region
          %s1596 = ssub.s32 128, 128
          %1597 = vsyncadd %s1588, %s1596
          %s1598 = sadd.s32 %s42, %s41
          %s1599 = smul.addr %s1598, 128
          %s1600 = scalar_lea.hbm %s11, %s1599
          %s1602 = sshll.u32 %s1591, 4
          %s1603 = int_to_ptr.vmem [resolvable:$true] %s1602
          %1605 = dma.vmem_to_hbm [thread:$0]  %s1603, 128, %s1600, %s1588
        $region108: #{tpu_custom_call.1} parent=63 // pred_fallthru
          _
      $region64: #{tpu_custom_call.1} parent=5 // pred_fallthru
        _
      %p1606 = scmp.le.s32.totalorder 2, %s31
      // Predicated region
      $region109: #{tpu_custom_call.1} parent=5 // pred_check
        %p1607 = pneg %p1606
      $region110: #{tpu_custom_call.1} parent=5 // pred_check_branch
        %1609 = sbr.rel (%p1607) target = $region112
      $region111: #{tpu_custom_call.1} parent=5 // pred_region
        %s1610 = ssub.s32 %s31, 2
        // Predicated region
        $region113: #{tpu_custom_call.1} parent=111 // pred_check
          %p1611 = pneg %p353
        $region114: #{tpu_custom_call.1} parent=111 // pred_check_branch
          %1613 = sbr.rel (%p1611) target = $region116
        $region115: #{tpu_custom_call.1} parent=111 // pred_region
          %s1614 = sand.u32 %s338, 1
          %s1615 = scalar_lea.sflag [#allocation4], %s1614
          %s1616 = sand.u32 %s338, 1
          %s1617 = smul.addr %s1616, 8
          %s1618 = scalar_lea.vmem [#allocation17], %s1617
          %1619 = dma.done %s1615, 128
        $region116: #{tpu_custom_call.1} parent=111 // pred_fallthru
          _
      $region112: #{tpu_custom_call.1} parent=5 // pred_fallthru
        _
    $region6: #{tpu_custom_call.1} parent=1 // loop_footer
      %s35 = sadd.s32 1, %s31
    $region7: #{tpu_custom_call.1} parent=1 // loop_footer_branch
      %30 = sbr.rel target = $region3
    $region8: #{tpu_custom_call.1} parent=1 // loop_exit
      _
    %1620 = vsyncpa [#allocation3], 1
    %s1621 = scalar_lea.sflag [#allocation3], 1
    %1622 = vsyncpa %s1621, 1
    %1623 = vsyncpa [#allocation6], 1
    %s1624 = scalar_lea.sflag [#allocation6], 1
    %1625 = vsyncpa %s1624, 1
    %1626 = vsyncpa [#allocation9], 1
    %s1627 = scalar_lea.sflag [#allocation9], 1
    %1628 = vsyncpa %s1627, 1
    %1629 = vsyncpa [#allocation12], 1
    %1630 = vsyncpa [#allocation15], 1
    %1631 = vsyncpa [#allocation4], 1
    %s1632 = scalar_lea.sflag [#allocation4], 1
    %1633 = vsyncpa %s1632, 1

</llo_original>
